<compile_context>
chip_gen: v7x
topology: tpu7x:2x2x1
jax: 0.10.0
libtpu: 0.0.40
codegen_flags: <defaults>
</compile_context>

<pallas_src>
import functools

import jax
import jax.numpy as jnp
import numpy as np
from jax import lax
from jax.experimental import pallas as pl
from jax.experimental.pallas import tpu as pltpu

EPS = 1e-5


def _vent_lstm_kernel(x_ref, gamma_ref, beta_ref, wih_ref, whh_ref, bg_ref,
                      wden_ref, bden_ref, out_ref, gin_ref,
                      *, hidden_size, batch_pad, n_valid, seq_len):
    """Whole forward in one kernel (tiny model, everything fits in VMEM).

    x_ref:    (T*Bp, C)     f32   time-major, batch padded to Bp, zero-padded rows
    gamma/beta: (1, C)      f32   BatchNorm affine params
    wih_ref:  (C, 4H)       f32   LSTM input weights  (g columns pre-scaled x2)
    whh_ref:  (H, 4H)       f32   LSTM recurrent weights (g columns pre-scaled x2)
    bg_ref:   (1, 4H)       f32   combined LSTM bias (b_ih+b_hh, g slots x2)
    wden_ref: (H, Np)       f32   final Linear weight, zero-padded to Np=128 lanes
    bden_ref: (1, Np)       f32   final Linear bias, zero-padded
    out_ref:  (T*Bp, Np)    f32   lane-dense output (unpadded in the wrapper)
    gin_ref:  (T*Bp, 4H)    VMEM scratch  (precomputed input projection)
    """
    H = hidden_size
    Bp = batch_pad

    x = x_ref[...]                                     # (T*Bp, C)

    # ---- BatchNorm1d (training-mode batch stats, biased variance) ----
    # Zero-padded batch rows contribute exactly 0 to both sums, so dividing by the
    # real element count n_valid = B*T gives the exact batch statistics.
    inv_n = 1.0 / float(n_valid)
    s1 = jnp.sum(x, axis=0, keepdims=True)             # (1, C) sublane reduction
    s2 = jnp.sum(x * x, axis=0, keepdims=True)         # (1, C)
    mean = s1 * inv_n
    var = jnp.maximum(s2 * inv_n - mean * mean, 0.0)   # clamp: fp32 E[x^2]-m^2 can dip <0
    scale = lax.rsqrt(var + EPS) * gamma_ref[...]      # (1, C)
    xn = (x - mean) * scale + beta_ref[...]            # (T*Bp, C)

    # ---- LSTM input projection for all time steps: one lane-dense 2-D matmul ----
    gin_ref[...] = (jnp.dot(xn, wih_ref[...], preferred_element_type=jnp.float32)
                    + bg_ref[...])                     # (T*Bp, 4H)

    # ---- LSTM recurrence (PyTorch gate order: i, f, g, o) ----
    whh = whh_ref[...]                                 # (H, 4H) hoisted out of loop
    wden = wden_ref[...]                               # (H, Np) hoisted
    bden = bden_ref[...]                               # (1, Np) hoisted

    def step(t, carry):
        h, c = carry
        row = pl.multiple_of(t * Bp, Bp)
        gates = gin_ref[pl.ds(row, Bp), :] + jnp.dot(
            h, whh, preferred_element_type=jnp.float32)          # (Bp, 4H)
        # Single full-width EUP pass: g-gate columns were pre-scaled by 2 in the
        # wrapper, so tanh(z) = 2*sigmoid(2z) - 1 falls out of the same sigmoid.
        sig = jax.nn.sigmoid(gates)
        i = sig[:, 0 * H:1 * H]
        f = sig[:, 1 * H:2 * H]
        g = 2.0 * sig[:, 2 * H:3 * H] - 1.0            # == tanh(original g preact)
        o = sig[:, 3 * H:4 * H]
        c = f * c + i * g
        h = o * jnp.tanh(c)
        # Fused dense head: off the h->c->h chain, hidden under step t+1 by the
        # scheduler once the loop is unrolled. Lane-dense (Bp, Np=128) store.
        out_ref[pl.ds(row, Bp), :] = (
            jnp.dot(h, wden, preferred_element_type=jnp.float32) + bden
        ).astype(out_ref.dtype)
        return (h, c)

    h0 = jnp.zeros((Bp, H), jnp.float32)
    c0 = jnp.zeros((Bp, H), jnp.float32)
    # T is small and static: fully unroll so the LLO scheduler can overlap the MXU
    # pushes (recurrence of t+1, head of t) with the EUP/VPU tail of step t.
    lax.fori_loop(0, seq_len, step, (h0, c0), unroll=True)


def vent_lstm_forward(x, params, *, hidden_size, n_cls):
    """x: (B, C, T) float32  ->  (B, T, n_cls) float32."""
    B, C, T = x.shape
    H = hidden_size
    Bp = ((B + 7) // 8) * 8                            # pad batch to full sublanes
    Np = ((n_cls + 127) // 128) * 128                  # lane-dense output width

    # ---- layout plumbing outside the kernel (cheap XLA ops) ----
    xs = jnp.transpose(x, (2, 0, 1)).astype(jnp.float32)   # (T, B, C) time-major
    xs = jnp.pad(xs, ((0, 0), (0, Bp - B), (0, 0)))        # (T, Bp, C) zero-padded
    x2d = xs.reshape(T * Bp, C)

    gamma = params['gamma'].reshape(1, C)
    beta = params['beta'].reshape(1, C)

    # Pre-scale the g-gate rows by 2 so the kernel needs a single sigmoid pass:
    # tanh(z) = 2*sigmoid(2z) - 1.
    gate_scale = jnp.ones((4 * H,), jnp.float32).at[2 * H:3 * H].set(2.0)
    wih_t = (params['w_ih'] * gate_scale[:, None]).T   # (C, 4H)
    whh_t = (params['w_hh'] * gate_scale[:, None]).T   # (H, 4H)
    bg = ((params['b_ih'] + params['b_hh']) * gate_scale).reshape(1, 4 * H)

    wden_t = jnp.zeros((H, Np), jnp.float32).at[:, :n_cls].set(params['w_den'].T)
    bden = jnp.zeros((1, Np), jnp.float32).at[:, :n_cls].set(
        params['b_den'].reshape(1, n_cls))

    kernel = functools.partial(_vent_lstm_kernel, hidden_size=H,
                               batch_pad=Bp, n_valid=B * T, seq_len=T)

    vmem = pl.BlockSpec(memory_space=pltpu.MemorySpace.VMEM)
    # Gridless single-core call: shapes are tiny and the T recurrence is serial.
    # For many independent sequences: stack them along the batch/sublane axis
    # (Bp -> 128/256) to fill the MXU rows, and/or add a leading "parallel" grid
    # axis over batch groups so v7x's second TensorCore is used; for very long T,
    # chunk the time axis with BlockSpecs ("arbitrary") and carry h/c in scratch
    # to stay under v7x's 64 MiB VMEM.
    out2d = pl.pallas_call(
        kernel,
        out_shape=jax.ShapeDtypeStruct((T * Bp, Np), jnp.float32),
        in_specs=[vmem] * 8,
        out_specs=vmem,
        scratch_shapes=[
            pltpu.VMEM((T * Bp, 4 * H), jnp.float32),  # input-projection buffer
        ],
    )(x2d, gamma, beta, wih_t, whh_t, bg, wden_t, bden)

    out = out2d.reshape(T, Bp, Np)[:, :B, :n_cls]      # drop batch/class padding
    return jnp.transpose(out, (1, 0, 2))               # (B, T, n_cls)


def ref_forward(x, params, *, hidden_size, n_cls):
    """Pure-JAX reference matching the PyTorch forward semantics."""
    B, C, T = x.shape
    H = hidden_size
    mean = jnp.mean(x, axis=(0, 2), keepdims=True)
    var = jnp.mean((x - mean) ** 2, axis=(0, 2), keepdims=True)
    xn = (x - mean) / jnp.sqrt(var + EPS)
    xn = xn * params['gamma'][None, :, None] + params['beta'][None, :, None]
    xs = jnp.transpose(xn, (0, 2, 1))                  # (B, T, C)

    b = params['b_ih'] + params['b_hh']
    h = jnp.zeros((B, H), jnp.float32)
    c = jnp.zeros((B, H), jnp.float32)
    outs = []
    for t in range(T):
        gates = xs[:, t, :] @ params['w_ih'].T + h @ params['w_hh'].T + b
        i = jax.nn.sigmoid(gates[:, 0 * H:1 * H])
        f = jax.nn.sigmoid(gates[:, 1 * H:2 * H])
        g = jnp.tanh(gates[:, 2 * H:3 * H])
        o = jax.nn.sigmoid(gates[:, 3 * H:4 * H])
        c = f * c + i * g
        h = o * jnp.tanh(c)
        outs.append(h)
    hs = jnp.stack(outs, axis=1)                       # (B, T, H)
    return hs @ params['w_den'].T + params['b_den']


def init_params(key, in_channels, hidden_size, n_cls):
    """Deterministic synthetic init mimicking the PyTorch default shapes."""
    H = hidden_size
    ks = jax.random.split(key, 6)
    k_lstm = 1.0 / np.sqrt(H)
    k_den = 1.0 / np.sqrt(H)
    return {
        'gamma': jnp.ones((in_channels,), jnp.float32),
        'beta': jnp.zeros((in_channels,), jnp.float32),
        'w_ih': jax.random.uniform(ks[0], (4 * H, in_channels), jnp.float32,
                                   -k_lstm, k_lstm),
        'w_hh': jax.random.uniform(ks[1], (4 * H, H), jnp.float32,
                                   -k_lstm, k_lstm),
        'b_ih': jax.random.uniform(ks[2], (4 * H,), jnp.float32,
                                   -k_lstm, k_lstm),
        'b_hh': jax.random.uniform(ks[3], (4 * H,), jnp.float32,
                                   -k_lstm, k_lstm),
        'w_den': jax.random.uniform(ks[4], (n_cls, H), jnp.float32,
                                    -k_den, k_den),
        'b_den': jax.random.uniform(ks[5], (n_cls,), jnp.float32,
                                    -k_den, k_den),
    }


if __name__ == "__main__":
    B, C, T = 2, 4, 8            # batch, in_channels, sequence length
    H, N_CLS = 32, 5             # hidden_size, number of classes

    key = jax.random.PRNGKey(0)
    k_x, k_p = jax.random.split(key)
    x = jax.random.normal(k_x, (B, C, T), jnp.float32)
    params = init_params(k_p, C, H, N_CLS)

    out = vent_lstm_forward(x, params, hidden_size=H, n_cls=N_CLS)
    out = jax.block_until_ready(out)

    ref = ref_forward(x, params, hidden_size=H, n_cls=N_CLS)
    assert out.shape == (B, T, N_CLS)
    np.testing.assert_allclose(np.asarray(out), np.asarray(ref),
                               rtol=1e-2, atol=1e-2)
    print("KERNEL_OK")
</pallas_src>

<mosaic_0001>
module attributes {stable_mosaic.version = 11 : i64} {
  func.func @_vent_lstm_kernel(%arg0: memref<64x4xf32, #tpu.memory_space<vmem>>, %arg1: memref<1x4xf32, #tpu.memory_space<vmem>>, %arg2: memref<1x4xf32, #tpu.memory_space<vmem>>, %arg3: memref<4x128xf32, #tpu.memory_space<vmem>>, %arg4: memref<32x128xf32, #tpu.memory_space<vmem>>, %arg5: memref<1x128xf32, #tpu.memory_space<vmem>>, %arg6: memref<32x128xf32, #tpu.memory_space<vmem>>, %arg7: memref<1x128xf32, #tpu.memory_space<vmem>>, %arg8: memref<64x128xf32, #tpu.memory_space<vmem>>, %arg9: memref<64x128xf32, #tpu.memory_space<vmem>>) attributes {dimension_semantics = [], scalar_prefetch = 0 : i64, scratch_operands = 1 : i64, tpu.core_type = #tpu.core_type<tc>} {
    %c0 = arith.constant 0 : index
    %c0_0 = arith.constant 0 : index
    %0 = vector.load %arg0[%c0, %c0_0] : memref<64x4xf32, #tpu.memory_space<vmem>>, vector<64x4xf32>
    %cst = arith.constant dense<0.000000e+00> : vector<4xf32>
    %1 = vector.multi_reduction <add>, %0, %cst [0] : vector<64x4xf32> to vector<4xf32>
    %2 = vector.shape_cast %1 : vector<4xf32> to vector<1x4xf32>
    %3 = arith.mulf %0, %0 : vector<64x4xf32>
    %cst_1 = arith.constant dense<0.000000e+00> : vector<4xf32>
    %4 = vector.multi_reduction <add>, %3, %cst_1 [0] : vector<64x4xf32> to vector<4xf32>
    %5 = vector.shape_cast %4 : vector<4xf32> to vector<1x4xf32>
    %cst_2 = arith.constant 6.250000e-02 : f32
    %6 = vector.broadcast %cst_2 : f32 to vector<1x4xf32>
    %7 = arith.mulf %2, %6 : vector<1x4xf32>
    %cst_3 = arith.constant 6.250000e-02 : f32
    %8 = vector.broadcast %cst_3 : f32 to vector<1x4xf32>
    %9 = arith.mulf %5, %8 : vector<1x4xf32>
    %10 = arith.mulf %7, %7 : vector<1x4xf32>
    %11 = arith.subf %9, %10 : vector<1x4xf32>
    %cst_4 = arith.constant 0.000000e+00 : f32
    %12 = vector.broadcast %cst_4 : f32 to vector<1x4xf32>
    %13 = arith.maximumf %11, %12 : vector<1x4xf32>
    %cst_5 = arith.constant 9.99999974E-6 : f32
    %14 = vector.broadcast %cst_5 : f32 to vector<1x4xf32>
    %15 = arith.addf %13, %14 : vector<1x4xf32>
    %16 = math.rsqrt %15 : vector<1x4xf32>
    %c0_6 = arith.constant 0 : index
    %c0_7 = arith.constant 0 : index
    %17 = vector.load %arg1[%c0_6, %c0_7] : memref<1x4xf32, #tpu.memory_space<vmem>>, vector<1x4xf32>
    %18 = arith.mulf %16, %17 : vector<1x4xf32>
    %19 = vector.broadcast %7 : vector<1x4xf32> to vector<64x4xf32>
    %20 = arith.subf %0, %19 : vector<64x4xf32>
    %21 = vector.broadcast %18 : vector<1x4xf32> to vector<64x4xf32>
    %22 = arith.mulf %20, %21 : vector<64x4xf32>
    %c0_8 = arith.constant 0 : index
    %c0_9 = arith.constant 0 : index
    %23 = vector.load %arg2[%c0_8, %c0_9] : memref<1x4xf32, #tpu.memory_space<vmem>>, vector<1x4xf32>
    %24 = vector.broadcast %23 : vector<1x4xf32> to vector<64x4xf32>
    %25 = arith.addf %22, %24 : vector<64x4xf32>
    %c0_10 = arith.constant 0 : index
    %c0_11 = arith.constant 0 : index
    %26 = vector.load %arg3[%c0_10, %c0_11] : memref<4x128xf32, #tpu.memory_space<vmem>>, vector<4x128xf32>
    %cst_12 = arith.constant dense<0.000000e+00> : vector<64x128xf32>
    %27 = tpu.matmul %25, %26, %cst_12 {dimension_numbers = #tpu.dot_dimension_numbers<[1], [0], [0], [1], [0, 0, 1, 1], [], []>} : vector<64x4xf32>, vector<4x128xf32>, vector<64x128xf32> -> vector<64x128xf32>
    %c0_13 = arith.constant 0 : index
    %c0_14 = arith.constant 0 : index
    %28 = vector.load %arg5[%c0_13, %c0_14] : memref<1x128xf32, #tpu.memory_space<vmem>>, vector<1x128xf32>
    %29 = vector.broadcast %28 : vector<1x128xf32> to vector<64x128xf32>
    %30 = arith.addf %27, %29 : vector<64x128xf32>
    %c0_15 = arith.constant 0 : index
    %c0_16 = arith.constant 0 : index
    %31 = vector.load %arg9[%c0_15, %c0_16] : memref<64x128xf32, #tpu.memory_space<vmem>>, vector<64x128xf32>
    tpu.vector_store %arg9[%c0_15, %c0_16], %30 {strides = array<i32>} : memref<64x128xf32, #tpu.memory_space<vmem>>, vector<64x128xf32>,
    %c0_17 = arith.constant 0 : index
    %c0_18 = arith.constant 0 : index
    %32 = vector.load %arg4[%c0_17, %c0_18] : memref<32x128xf32, #tpu.memory_space<vmem>>, vector<32x128xf32>
    %c0_19 = arith.constant 0 : index
    %c0_20 = arith.constant 0 : index
    %33 = vector.load %arg6[%c0_19, %c0_20] : memref<32x128xf32, #tpu.memory_space<vmem>>, vector<32x128xf32>
    %c0_21 = arith.constant 0 : index
    %c0_22 = arith.constant 0 : index
    %34 = vector.load %arg7[%c0_21, %c0_22] : memref<1x128xf32, #tpu.memory_space<vmem>>, vector<1x128xf32>
    %cst_23 = arith.constant 0.000000e+00 : f32
    %35 = vector.broadcast %cst_23 : f32 to vector<8x32xf32>
    %cst_24 = arith.constant 0.000000e+00 : f32
    %36 = vector.broadcast %cst_24 : f32 to vector<8x32xf32>
    %c0_i32 = arith.constant 0 : i32
    %c8_i32 = arith.constant 8 : i32
    %37 = arith.muli %c0_i32, %c8_i32 : i32
    %38 = tpu.assume_multiple %37, 8 : i32
    %39 = arith.index_cast %38 : i32 to index
    %c0_25 = arith.constant 0 : index
    %40 = vector.load %arg9[%39, %c0_25] : memref<64x128xf32, #tpu.memory_space<vmem>>, vector<8x128xf32>
    %cst_26 = arith.constant dense<0.000000e+00> : vector<8x128xf32>
    %41 = tpu.matmul %35, %32, %cst_26 {dimension_numbers = #tpu.dot_dimension_numbers<[1], [0], [0], [1], [0, 0, 1, 1], [], []>} : vector<8x32xf32>, vector<32x128xf32>, vector<8x128xf32> -> vector<8x128xf32>
    %42 = arith.addf %40, %41 : vector<8x128xf32>
    %43 = arith.negf %42 : vector<8x128xf32>
    %44 = math.exp %43 : vector<8x128xf32>
    %cst_27 = arith.constant 1.000000e+00 : f32
    %45 = vector.broadcast %cst_27 : f32 to vector<8x128xf32>
    %46 = arith.addf %45, %44 : vector<8x128xf32>
    %47 = arith.divf %45, %46 : vector<8x128xf32>
    %48 = vector.extract_strided_slice %47 {offsets = [0, 0], sizes = [8, 32], strides = [1, 1]} : vector<8x128xf32> to vector<8x32xf32>
    %49 = vector.extract_strided_slice %47 {offsets = [0, 32], sizes = [8, 32], strides = [1, 1]} : vector<8x128xf32> to vector<8x32xf32>
    %50 = vector.extract_strided_slice %47 {offsets = [0, 64], sizes = [8, 32], strides = [1, 1]} : vector<8x128xf32> to vector<8x32xf32>
    %cst_28 = arith.constant 2.000000e+00 : f32
    %51 = vector.broadcast %cst_28 : f32 to vector<8x32xf32>
    %52 = arith.mulf %51, %50 : vector<8x32xf32>
    %cst_29 = arith.constant 1.000000e+00 : f32
    %53 = vector.broadcast %cst_29 : f32 to vector<8x32xf32>
    %54 = arith.subf %52, %53 : vector<8x32xf32>
    %55 = vector.extract_strided_slice %47 {offsets = [0, 96], sizes = [8, 32], strides = [1, 1]} : vector<8x128xf32> to vector<8x32xf32>
    %56 = arith.mulf %49, %36 : vector<8x32xf32>
    %57 = arith.mulf %48, %54 : vector<8x32xf32>
    %58 = arith.addf %56, %57 : vector<8x32xf32>
    %59 = math.tanh %58 : vector<8x32xf32>
    %60 = arith.mulf %55, %59 : vector<8x32xf32>
    %cst_30 = arith.constant dense<0.000000e+00> : vector<8x128xf32>
    %61 = tpu.matmul %60, %33, %cst_30 {dimension_numbers = #tpu.dot_dimension_numbers<[1], [0], [0], [1], [0, 0, 1, 1], [], []>} : vector<8x32xf32>, vector<32x128xf32>, vector<8x128xf32> -> vector<8x128xf32>
    %62 = vector.broadcast %34 : vector<1x128xf32> to vector<8x128xf32>
    %63 = arith.addf %61, %62 : vector<8x128xf32>
    %64 = arith.index_cast %38 : i32 to index
    %c0_31 = arith.constant 0 : index
    %65 = vector.load %arg8[%64, %c0_31] : memref<64x128xf32, #tpu.memory_space<vmem>>, vector<8x128xf32>
    tpu.vector_store %arg8[%64, %c0_31], %63 {strides = array<i32>} : memref<64x128xf32, #tpu.memory_space<vmem>>, vector<8x128xf32>,
    %c1_i32 = arith.constant 1 : i32
    %c8_i32_32 = arith.constant 8 : i32
    %66 = arith.muli %c1_i32, %c8_i32_32 : i32
    %67 = tpu.assume_multiple %66, 8 : i32
    %68 = arith.index_cast %67 : i32 to index
    %c0_33 = arith.constant 0 : index
    %69 = vector.load %arg9[%68, %c0_33] : memref<64x128xf32, #tpu.memory_space<vmem>>, vector<8x128xf32>
    %cst_34 = arith.constant dense<0.000000e+00> : vector<8x128xf32>
    %70 = tpu.matmul %60, %32, %cst_34 {dimension_numbers = #tpu.dot_dimension_numbers<[1], [0], [0], [1], [0, 0, 1, 1], [], []>} : vector<8x32xf32>, vector<32x128xf32>, vector<8x128xf32> -> vector<8x128xf32>
    %71 = arith.addf %69, %70 : vector<8x128xf32>
    %72 = arith.negf %71 : vector<8x128xf32>
    %73 = math.exp %72 : vector<8x128xf32>
    %cst_35 = arith.constant 1.000000e+00 : f32
    %74 = vector.broadcast %cst_35 : f32 to vector<8x128xf32>
    %75 = arith.addf %74, %73 : vector<8x128xf32>
    %76 = arith.divf %74, %75 : vector<8x128xf32>
    %77 = vector.extract_strided_slice %76 {offsets = [0, 0], sizes = [8, 32], strides = [1, 1]} : vector<8x128xf32> to vector<8x32xf32>
    %78 = vector.extract_strided_slice %76 {offsets = [0, 32], sizes = [8, 32], strides = [1, 1]} : vector<8x128xf32> to vector<8x32xf32>
    %79 = vector.extract_strided_slice %76 {offsets = [0, 64], sizes = [8, 32], strides = [1, 1]} : vector<8x128xf32> to vector<8x32xf32>
    %cst_36 = arith.constant 2.000000e+00 : f32
    %80 = vector.broadcast %cst_36 : f32 to vector<8x32xf32>
    %81 = arith.mulf %80, %79 : vector<8x32xf32>
    %cst_37 = arith.constant 1.000000e+00 : f32
    %82 = vector.broadcast %cst_37 : f32 to vector<8x32xf32>
    %83 = arith.subf %81, %82 : vector<8x32xf32>
    %84 = vector.extract_strided_slice %76 {offsets = [0, 96], sizes = [8, 32], strides = [1, 1]} : vector<8x128xf32> to vector<8x32xf32>
    %85 = arith.mulf %78, %58 : vector<8x32xf32>
    %86 = arith.mulf %77, %83 : vector<8x32xf32>
    %87 = arith.addf %85, %86 : vector<8x32xf32>
    %88 = math.tanh %87 : vector<8x32xf32>
    %89 = arith.mulf %84, %88 : vector<8x32xf32>
    %cst_38 = arith.constant dense<0.000000e+00> : vector<8x128xf32>
    %90 = tpu.matmul %89, %33, %cst_38 {dimension_numbers = #tpu.dot_dimension_numbers<[1], [0], [0], [1], [0, 0, 1, 1], [], []>} : vector<8x32xf32>, vector<32x128xf32>, vector<8x128xf32> -> vector<8x128xf32>
    %91 = vector.broadcast %34 : vector<1x128xf32> to vector<8x128xf32>
    %92 = arith.addf %90, %91 : vector<8x128xf32>
    %93 = arith.index_cast %67 : i32 to index
    %c0_39 = arith.constant 0 : index
    %94 = vector.load %arg8[%93, %c0_39] : memref<64x128xf32, #tpu.memory_space<vmem>>, vector<8x128xf32>
    tpu.vector_store %arg8[%93, %c0_39], %92 {strides = array<i32>} : memref<64x128xf32, #tpu.memory_space<vmem>>, vector<8x128xf32>,
    %c2_i32 = arith.constant 2 : i32
    %c8_i32_40 = arith.constant 8 : i32
    %95 = arith.muli %c2_i32, %c8_i32_40 : i32
    %96 = tpu.assume_multiple %95, 8 : i32
    %97 = arith.index_cast %96 : i32 to index
    %c0_41 = arith.constant 0 : index
    %98 = vector.load %arg9[%97, %c0_41] : memref<64x128xf32, #tpu.memory_space<vmem>>, vector<8x128xf32>
    %cst_42 = arith.constant dense<0.000000e+00> : vector<8x128xf32>
    %99 = tpu.matmul %89, %32, %cst_42 {dimension_numbers = #tpu.dot_dimension_numbers<[1], [0], [0], [1], [0, 0, 1, 1], [], []>} : vector<8x32xf32>, vector<32x128xf32>, vector<8x128xf32> -> vector<8x128xf32>
    %100 = arith.addf %98, %99 : vector<8x128xf32>
    %101 = arith.negf %100 : vector<8x128xf32>
    %102 = math.exp %101 : vector<8x128xf32>
    %cst_43 = arith.constant 1.000000e+00 : f32
    %103 = vector.broadcast %cst_43 : f32 to vector<8x128xf32>
    %104 = arith.addf %103, %102 : vector<8x128xf32>
    %105 = arith.divf %103, %104 : vector<8x128xf32>
    %106 = vector.extract_strided_slice %105 {offsets = [0, 0], sizes = [8, 32], strides = [1, 1]} : vector<8x128xf32> to vector<8x32xf32>
    %107 = vector.extract_strided_slice %105 {offsets = [0, 32], sizes = [8, 32], strides = [1, 1]} : vector<8x128xf32> to vector<8x32xf32>
    %108 = vector.extract_strided_slice %105 {offsets = [0, 64], sizes = [8, 32], strides = [1, 1]} : vector<8x128xf32> to vector<8x32xf32>
    %cst_44 = arith.constant 2.000000e+00 : f32
    %109 = vector.broadcast %cst_44 : f32 to vector<8x32xf32>
    %110 = arith.mulf %109, %108 : vector<8x32xf32>
    %cst_45 = arith.constant 1.000000e+00 : f32
    %111 = vector.broadcast %cst_45 : f32 to vector<8x32xf32>
    %112 = arith.subf %110, %111 : vector<8x32xf32>
    %113 = vector.extract_strided_slice %105 {offsets = [0, 96], sizes = [8, 32], strides = [1, 1]} : vector<8x128xf32> to vector<8x32xf32>
    %114 = arith.mulf %107, %87 : vector<8x32xf32>
    %115 = arith.mulf %106, %112 : vector<8x32xf32>
    %116 = arith.addf %114, %115 : vector<8x32xf32>
    %117 = math.tanh %116 : vector<8x32xf32>
    %118 = arith.mulf %113, %117 : vector<8x32xf32>
    %cst_46 = arith.constant dense<0.000000e+00> : vector<8x128xf32>
    %119 = tpu.matmul %118, %33, %cst_46 {dimension_numbers = #tpu.dot_dimension_numbers<[1], [0], [0], [1], [0, 0, 1, 1], [], []>} : vector<8x32xf32>, vector<32x128xf32>, vector<8x128xf32> -> vector<8x128xf32>
    %120 = vector.broadcast %34 : vector<1x128xf32> to vector<8x128xf32>
    %121 = arith.addf %119, %120 : vector<8x128xf32>
    %122 = arith.index_cast %96 : i32 to index
    %c0_47 = arith.constant 0 : index
    %123 = vector.load %arg8[%122, %c0_47] : memref<64x128xf32, #tpu.memory_space<vmem>>, vector<8x128xf32>
    tpu.vector_store %arg8[%122, %c0_47], %121 {strides = array<i32>} : memref<64x128xf32, #tpu.memory_space<vmem>>, vector<8x128xf32>,
    %c3_i32 = arith.constant 3 : i32
    %c8_i32_48 = arith.constant 8 : i32
    %124 = arith.muli %c3_i32, %c8_i32_48 : i32
    %125 = tpu.assume_multiple %124, 8 : i32
    %126 = arith.index_cast %125 : i32 to index
    %c0_49 = arith.constant 0 : index
    %127 = vector.load %arg9[%126, %c0_49] : memref<64x128xf32, #tpu.memory_space<vmem>>, vector<8x128xf32>
    %cst_50 = arith.constant dense<0.000000e+00> : vector<8x128xf32>
    %128 = tpu.matmul %118, %32, %cst_50 {dimension_numbers = #tpu.dot_dimension_numbers<[1], [0], [0], [1], [0, 0, 1, 1], [], []>} : vector<8x32xf32>, vector<32x128xf32>, vector<8x128xf32> -> vector<8x128xf32>
    %129 = arith.addf %127, %128 : vector<8x128xf32>
    %130 = arith.negf %129 : vector<8x128xf32>
    %131 = math.exp %130 : vector<8x128xf32>
    %cst_51 = arith.constant 1.000000e+00 : f32
    %132 = vector.broadcast %cst_51 : f32 to vector<8x128xf32>
    %133 = arith.addf %132, %131 : vector<8x128xf32>
    %134 = arith.divf %132, %133 : vector<8x128xf32>
    %135 = vector.extract_strided_slice %134 {offsets = [0, 0], sizes = [8, 32], strides = [1, 1]} : vector<8x128xf32> to vector<8x32xf32>
    %136 = vector.extract_strided_slice %134 {offsets = [0, 32], sizes = [8, 32], strides = [1, 1]} : vector<8x128xf32> to vector<8x32xf32>
    %137 = vector.extract_strided_slice %134 {offsets = [0, 64], sizes = [8, 32], strides = [1, 1]} : vector<8x128xf32> to vector<8x32xf32>
    %cst_52 = arith.constant 2.000000e+00 : f32
    %138 = vector.broadcast %cst_52 : f32 to vector<8x32xf32>
    %139 = arith.mulf %138, %137 : vector<8x32xf32>
    %cst_53 = arith.constant 1.000000e+00 : f32
    %140 = vector.broadcast %cst_53 : f32 to vector<8x32xf32>
    %141 = arith.subf %139, %140 : vector<8x32xf32>
    %142 = vector.extract_strided_slice %134 {offsets = [0, 96], sizes = [8, 32], strides = [1, 1]} : vector<8x128xf32> to vector<8x32xf32>
    %143 = arith.mulf %136, %116 : vector<8x32xf32>
    %144 = arith.mulf %135, %141 : vector<8x32xf32>
    %145 = arith.addf %143, %144 : vector<8x32xf32>
    %146 = math.tanh %145 : vector<8x32xf32>
    %147 = arith.mulf %142, %146 : vector<8x32xf32>
    %cst_54 = arith.constant dense<0.000000e+00> : vector<8x128xf32>
    %148 = tpu.matmul %147, %33, %cst_54 {dimension_numbers = #tpu.dot_dimension_numbers<[1], [0], [0], [1], [0, 0, 1, 1], [], []>} : vector<8x32xf32>, vector<32x128xf32>, vector<8x128xf32> -> vector<8x128xf32>
    %149 = vector.broadcast %34 : vector<1x128xf32> to vector<8x128xf32>
    %150 = arith.addf %148, %149 : vector<8x128xf32>
    %151 = arith.index_cast %125 : i32 to index
    %c0_55 = arith.constant 0 : index
    %152 = vector.load %arg8[%151, %c0_55] : memref<64x128xf32, #tpu.memory_space<vmem>>, vector<8x128xf32>
    tpu.vector_store %arg8[%151, %c0_55], %150 {strides = array<i32>} : memref<64x128xf32, #tpu.memory_space<vmem>>, vector<8x128xf32>,
    %c4_i32 = arith.constant 4 : i32
    %c8_i32_56 = arith.constant 8 : i32
    %153 = arith.muli %c4_i32, %c8_i32_56 : i32
    %154 = tpu.assume_multiple %153, 8 : i32
    %155 = arith.index_cast %154 : i32 to index
    %c0_57 = arith.constant 0 : index
    %156 = vector.load %arg9[%155, %c0_57] : memref<64x128xf32, #tpu.memory_space<vmem>>, vector<8x128xf32>
    %cst_58 = arith.constant dense<0.000000e+00> : vector<8x128xf32>
    %157 = tpu.matmul %147, %32, %cst_58 {dimension_numbers = #tpu.dot_dimension_numbers<[1], [0], [0], [1], [0, 0, 1, 1], [], []>} : vector<8x32xf32>, vector<32x128xf32>, vector<8x128xf32> -> vector<8x128xf32>
    %158 = arith.addf %156, %157 : vector<8x128xf32>
    %159 = arith.negf %158 : vector<8x128xf32>
    %160 = math.exp %159 : vector<8x128xf32>
    %cst_59 = arith.constant 1.000000e+00 : f32
    %161 = vector.broadcast %cst_59 : f32 to vector<8x128xf32>
    %162 = arith.addf %161, %160 : vector<8x128xf32>
    %163 = arith.divf %161, %162 : vector<8x128xf32>
    %164 = vector.extract_strided_slice %163 {offsets = [0, 0], sizes = [8, 32], strides = [1, 1]} : vector<8x128xf32> to vector<8x32xf32>
    %165 = vector.extract_strided_slice %163 {offsets = [0, 32], sizes = [8, 32], strides = [1, 1]} : vector<8x128xf32> to vector<8x32xf32>
    %166 = vector.extract_strided_slice %163 {offsets = [0, 64], sizes = [8, 32], strides = [1, 1]} : vector<8x128xf32> to vector<8x32xf32>
    %cst_60 = arith.constant 2.000000e+00 : f32
    %167 = vector.broadcast %cst_60 : f32 to vector<8x32xf32>
    %168 = arith.mulf %167, %166 : vector<8x32xf32>
    %cst_61 = arith.constant 1.000000e+00 : f32
    %169 = vector.broadcast %cst_61 : f32 to vector<8x32xf32>
    %170 = arith.subf %168, %169 : vector<8x32xf32>
    %171 = vector.extract_strided_slice %163 {offsets = [0, 96], sizes = [8, 32], strides = [1, 1]} : vector<8x128xf32> to vector<8x32xf32>
    %172 = arith.mulf %165, %145 : vector<8x32xf32>
    %173 = arith.mulf %164, %170 : vector<8x32xf32>
    %174 = arith.addf %172, %173 : vector<8x32xf32>
    %175 = math.tanh %174 : vector<8x32xf32>
    %176 = arith.mulf %171, %175 : vector<8x32xf32>
    %cst_62 = arith.constant dense<0.000000e+00> : vector<8x128xf32>
    %177 = tpu.matmul %176, %33, %cst_62 {dimension_numbers = #tpu.dot_dimension_numbers<[1], [0], [0], [1], [0, 0, 1, 1], [], []>} : vector<8x32xf32>, vector<32x128xf32>, vector<8x128xf32> -> vector<8x128xf32>
    %178 = vector.broadcast %34 : vector<1x128xf32> to vector<8x128xf32>
    %179 = arith.addf %177, %178 : vector<8x128xf32>
    %180 = arith.index_cast %154 : i32 to index
    %c0_63 = arith.constant 0 : index
    %181 = vector.load %arg8[%180, %c0_63] : memref<64x128xf32, #tpu.memory_space<vmem>>, vector<8x128xf32>
    tpu.vector_store %arg8[%180, %c0_63], %179 {strides = array<i32>} : memref<64x128xf32, #tpu.memory_space<vmem>>, vector<8x128xf32>,
    %c5_i32 = arith.constant 5 : i32
    %c8_i32_64 = arith.constant 8 : i32
    %182 = arith.muli %c5_i32, %c8_i32_64 : i32
    %183 = tpu.assume_multiple %182, 8 : i32
    %184 = arith.index_cast %183 : i32 to index
    %c0_65 = arith.constant 0 : index
    %185 = vector.load %arg9[%184, %c0_65] : memref<64x128xf32, #tpu.memory_space<vmem>>, vector<8x128xf32>
    %cst_66 = arith.constant dense<0.000000e+00> : vector<8x128xf32>
    %186 = tpu.matmul %176, %32, %cst_66 {dimension_numbers = #tpu.dot_dimension_numbers<[1], [0], [0], [1], [0, 0, 1, 1], [], []>} : vector<8x32xf32>, vector<32x128xf32>, vector<8x128xf32> -> vector<8x128xf32>
    %187 = arith.addf %185, %186 : vector<8x128xf32>
    %188 = arith.negf %187 : vector<8x128xf32>
    %189 = math.exp %188 : vector<8x128xf32>
    %cst_67 = arith.constant 1.000000e+00 : f32
    %190 = vector.broadcast %cst_67 : f32 to vector<8x128xf32>
    %191 = arith.addf %190, %189 : vector<8x128xf32>
    %192 = arith.divf %190, %191 : vector<8x128xf32>
    %193 = vector.extract_strided_slice %192 {offsets = [0, 0], sizes = [8, 32], strides = [1, 1]} : vector<8x128xf32> to vector<8x32xf32>
    %194 = vector.extract_strided_slice %192 {offsets = [0, 32], sizes = [8, 32], strides = [1, 1]} : vector<8x128xf32> to vector<8x32xf32>
    %195 = vector.extract_strided_slice %192 {offsets = [0, 64], sizes = [8, 32], strides = [1, 1]} : vector<8x128xf32> to vector<8x32xf32>
    %cst_68 = arith.constant 2.000000e+00 : f32
    %196 = vector.broadcast %cst_68 : f32 to vector<8x32xf32>
    %197 = arith.mulf %196, %195 : vector<8x32xf32>
    %cst_69 = arith.constant 1.000000e+00 : f32
    %198 = vector.broadcast %cst_69 : f32 to vector<8x32xf32>
    %199 = arith.subf %197, %198 : vector<8x32xf32>
    %200 = vector.extract_strided_slice %192 {offsets = [0, 96], sizes = [8, 32], strides = [1, 1]} : vector<8x128xf32> to vector<8x32xf32>
    %201 = arith.mulf %194, %174 : vector<8x32xf32>
    %202 = arith.mulf %193, %199 : vector<8x32xf32>
    %203 = arith.addf %201, %202 : vector<8x32xf32>
    %204 = math.tanh %203 : vector<8x32xf32>
    %205 = arith.mulf %200, %204 : vector<8x32xf32>
    %cst_70 = arith.constant dense<0.000000e+00> : vector<8x128xf32>
    %206 = tpu.matmul %205, %33, %cst_70 {dimension_numbers = #tpu.dot_dimension_numbers<[1], [0], [0], [1], [0, 0, 1, 1], [], []>} : vector<8x32xf32>, vector<32x128xf32>, vector<8x128xf32> -> vector<8x128xf32>
    %207 = vector.broadcast %34 : vector<1x128xf32> to vector<8x128xf32>
    %208 = arith.addf %206, %207 : vector<8x128xf32>
    %209 = arith.index_cast %183 : i32 to index
    %c0_71 = arith.constant 0 : index
    %210 = vector.load %arg8[%209, %c0_71] : memref<64x128xf32, #tpu.memory_space<vmem>>, vector<8x128xf32>
    tpu.vector_store %arg8[%209, %c0_71], %208 {strides = array<i32>} : memref<64x128xf32, #tpu.memory_space<vmem>>, vector<8x128xf32>,
    %c6_i32 = arith.constant 6 : i32
    %c8_i32_72 = arith.constant 8 : i32
    %211 = arith.muli %c6_i32, %c8_i32_72 : i32
    %212 = tpu.assume_multiple %211, 8 : i32
    %213 = arith.index_cast %212 : i32 to index
    %c0_73 = arith.constant 0 : index
    %214 = vector.load %arg9[%213, %c0_73] : memref<64x128xf32, #tpu.memory_space<vmem>>, vector<8x128xf32>
    %cst_74 = arith.constant dense<0.000000e+00> : vector<8x128xf32>
    %215 = tpu.matmul %205, %32, %cst_74 {dimension_numbers = #tpu.dot_dimension_numbers<[1], [0], [0], [1], [0, 0, 1, 1], [], []>} : vector<8x32xf32>, vector<32x128xf32>, vector<8x128xf32> -> vector<8x128xf32>
    %216 = arith.addf %214, %215 : vector<8x128xf32>
    %217 = arith.negf %216 : vector<8x128xf32>
    %218 = math.exp %217 : vector<8x128xf32>
    %cst_75 = arith.constant 1.000000e+00 : f32
    %219 = vector.broadcast %cst_75 : f32 to vector<8x128xf32>
    %220 = arith.addf %219, %218 : vector<8x128xf32>
    %221 = arith.divf %219, %220 : vector<8x128xf32>
    %222 = vector.extract_strided_slice %221 {offsets = [0, 0], sizes = [8, 32], strides = [1, 1]} : vector<8x128xf32> to vector<8x32xf32>
    %223 = vector.extract_strided_slice %221 {offsets = [0, 32], sizes = [8, 32], strides = [1, 1]} : vector<8x128xf32> to vector<8x32xf32>
    %224 = vector.extract_strided_slice %221 {offsets = [0, 64], sizes = [8, 32], strides = [1, 1]} : vector<8x128xf32> to vector<8x32xf32>
    %cst_76 = arith.constant 2.000000e+00 : f32
    %225 = vector.broadcast %cst_76 : f32 to vector<8x32xf32>
    %226 = arith.mulf %225, %224 : vector<8x32xf32>
    %cst_77 = arith.constant 1.000000e+00 : f32
    %227 = vector.broadcast %cst_77 : f32 to vector<8x32xf32>
    %228 = arith.subf %226, %227 : vector<8x32xf32>
    %229 = vector.extract_strided_slice %221 {offsets = [0, 96], sizes = [8, 32], strides = [1, 1]} : vector<8x128xf32> to vector<8x32xf32>
    %230 = arith.mulf %223, %203 : vector<8x32xf32>
    %231 = arith.mulf %222, %228 : vector<8x32xf32>
    %232 = arith.addf %230, %231 : vector<8x32xf32>
    %233 = math.tanh %232 : vector<8x32xf32>
    %234 = arith.mulf %229, %233 : vector<8x32xf32>
    %cst_78 = arith.constant dense<0.000000e+00> : vector<8x128xf32>
    %235 = tpu.matmul %234, %33, %cst_78 {dimension_numbers = #tpu.dot_dimension_numbers<[1], [0], [0], [1], [0, 0, 1, 1], [], []>} : vector<8x32xf32>, vector<32x128xf32>, vector<8x128xf32> -> vector<8x128xf32>
    %236 = vector.broadcast %34 : vector<1x128xf32> to vector<8x128xf32>
    %237 = arith.addf %235, %236 : vector<8x128xf32>
    %238 = arith.index_cast %212 : i32 to index
    %c0_79 = arith.constant 0 : index
    %239 = vector.load %arg8[%238, %c0_79] : memref<64x128xf32, #tpu.memory_space<vmem>>, vector<8x128xf32>
    tpu.vector_store %arg8[%238, %c0_79], %237 {strides = array<i32>} : memref<64x128xf32, #tpu.memory_space<vmem>>, vector<8x128xf32>,
    %c7_i32 = arith.constant 7 : i32
    %c8_i32_80 = arith.constant 8 : i32
    %240 = arith.muli %c7_i32, %c8_i32_80 : i32
    %241 = tpu.assume_multiple %240, 8 : i32
    %242 = arith.index_cast %241 : i32 to index
    %c0_81 = arith.constant 0 : index
    %243 = vector.load %arg9[%242, %c0_81] : memref<64x128xf32, #tpu.memory_space<vmem>>, vector<8x128xf32>
    %cst_82 = arith.constant dense<0.000000e+00> : vector<8x128xf32>
    %244 = tpu.matmul %234, %32, %cst_82 {dimension_numbers = #tpu.dot_dimension_numbers<[1], [0], [0], [1], [0, 0, 1, 1], [], []>} : vector<8x32xf32>, vector<32x128xf32>, vector<8x128xf32> -> vector<8x128xf32>
    %245 = arith.addf %243, %244 : vector<8x128xf32>
    %246 = arith.negf %245 : vector<8x128xf32>
    %247 = math.exp %246 : vector<8x128xf32>
    %cst_83 = arith.constant 1.000000e+00 : f32
    %248 = vector.broadcast %cst_83 : f32 to vector<8x128xf32>
    %249 = arith.addf %248, %247 : vector<8x128xf32>
    %250 = arith.divf %248, %249 : vector<8x128xf32>
    %251 = vector.extract_strided_slice %250 {offsets = [0, 0], sizes = [8, 32], strides = [1, 1]} : vector<8x128xf32> to vector<8x32xf32>
    %252 = vector.extract_strided_slice %250 {offsets = [0, 32], sizes = [8, 32], strides = [1, 1]} : vector<8x128xf32> to vector<8x32xf32>
    %253 = vector.extract_strided_slice %250 {offsets = [0, 64], sizes = [8, 32], strides = [1, 1]} : vector<8x128xf32> to vector<8x32xf32>
    %cst_84 = arith.constant 2.000000e+00 : f32
    %254 = vector.broadcast %cst_84 : f32 to vector<8x32xf32>
    %255 = arith.mulf %254, %253 : vector<8x32xf32>
    %cst_85 = arith.constant 1.000000e+00 : f32
    %256 = vector.broadcast %cst_85 : f32 to vector<8x32xf32>
    %257 = arith.subf %255, %256 : vector<8x32xf32>
    %258 = vector.extract_strided_slice %250 {offsets = [0, 96], sizes = [8, 32], strides = [1, 1]} : vector<8x128xf32> to vector<8x32xf32>
    %259 = arith.mulf %252, %232 : vector<8x32xf32>
    %260 = arith.mulf %251, %257 : vector<8x32xf32>
    %261 = arith.addf %259, %260 : vector<8x32xf32>
    %262 = math.tanh %261 : vector<8x32xf32>
    %263 = arith.mulf %258, %262 : vector<8x32xf32>
    %cst_86 = arith.constant dense<0.000000e+00> : vector<8x128xf32>
    %264 = tpu.matmul %263, %33, %cst_86 {dimension_numbers = #tpu.dot_dimension_numbers<[1], [0], [0], [1], [0, 0, 1, 1], [], []>} : vector<8x32xf32>, vector<32x128xf32>, vector<8x128xf32> -> vector<8x128xf32>
    %265 = vector.broadcast %34 : vector<1x128xf32> to vector<8x128xf32>
    %266 = arith.addf %264, %265 : vector<8x128xf32>
    %267 = arith.index_cast %241 : i32 to index
    %c0_87 = arith.constant 0 : index
    %268 = vector.load %arg8[%267, %c0_87] : memref<64x128xf32, #tpu.memory_space<vmem>>, vector<8x128xf32>
    tpu.vector_store %arg8[%267, %c0_87], %266 {strides = array<i32>} : memref<64x128xf32, #tpu.memory_space<vmem>>, vector<8x128xf32>,
    %c8_i32_88 = arith.constant 8 : i32
    return
  }
}

</mosaic_0001>

<llo_original>
// kernel: tpu_custom_call.1
$region0: #{tpu_custom_call.1}
  #allocation0 [shape = 'u32[]', space=smem, size = 0x4, offset = 0x4, fixed_abs, tag = 'smem constant byte address 0x4 - core index']
  #allocation1 [shape = 'u32[144,128]{1,0:T(1,128)}', space=vmem, size = 0x12000, scoped, tag = 'internal scratch']
  #allocation2 [shape = 'f32[64,128]{1,0:T(8,128)}', space=vmem, size = 0x8000, scoped, tag = 'scratch operand']
  %s0 = inlined_call_operand.vmem [shape: f32[64,4], index: 0, kind: input, shape index: {}]
  %s1 = inlined_call_operand.vmem [shape: f32[1,4], index: 1, kind: input, shape index: {}]
  %s2 = inlined_call_operand.vmem [shape: f32[1,4], index: 2, kind: input, shape index: {}]
  %s3 = inlined_call_operand.vmem [shape: f32[4,128], index: 3, kind: input, shape index: {}]
  %s4 = inlined_call_operand.vmem [shape: f32[32,128], index: 4, kind: input, shape index: {}]
  %s5 = inlined_call_operand.vmem [shape: f32[1,128], index: 5, kind: input, shape index: {}]
  %s6 = inlined_call_operand.vmem [shape: f32[32,128], index: 6, kind: input, shape index: {}]
  %s7 = inlined_call_operand.vmem [shape: f32[1,128], index: 7, kind: input, shape index: {}]
  %s8 = inlined_call_operand.hbm [shape: f32[64,128], index: 8, kind: output, shape index: {}]
  %s9 = sld [smem:[#allocation0]]
  $region42: #{tpu_custom_call.1} parent=0
    _
  %s11 = ssub.s32 1, %s9
  %s12 = scalar_select 0, %s11, %s9
  $region1: #{tpu_custom_call.1} parent=0
    #allocation3 [shape = 'u8[32768]{0}', space=vmem, size = 0x8000, scoped, tag = 'output window, operand 0, single buffered']
    #allocation4 [shape = 's32[1]{0}', space=sflag, size = 0x4, scoped, tag = 'scoped memory for tpu_custom_call.1']
    %13 = vsyncpa [#allocation4], 0
    // Predicated region
    $region2: #{tpu_custom_call.1} parent=1 // pred_check
      _
    $region3: #{tpu_custom_call.1} parent=1 // pred_check_branch
      %15 = sbr.rel (0) target = $region5
    $region4: #{tpu_custom_call.1} parent=1 // pred_region
      _
    $region5: #{tpu_custom_call.1} parent=1 // pred_fallthru
      _
    // Predicated region
    $region6: #{tpu_custom_call.1} parent=1 // pred_check
      _
    $region7: #{tpu_custom_call.1} parent=1 // pred_check_branch
      %17 = sbr.rel (0) target = $region9
    $region8: #{tpu_custom_call.1} parent=1 // pred_region
      _
    $region9: #{tpu_custom_call.1} parent=1 // pred_fallthru
      _
    // Predicated region
    $region10: #{tpu_custom_call.1} parent=1 // pred_check
      _
    $region11: #{tpu_custom_call.1} parent=1 // pred_check_branch
      %19 = sbr.rel (0) target = $region13
    $region12: #{tpu_custom_call.1} parent=1 // pred_region
      _
    $region13: #{tpu_custom_call.1} parent=1 // pred_fallthru
      _
    // Predicated region
    $region14: #{tpu_custom_call.1} parent=1 // pred_check
      _
    $region15: #{tpu_custom_call.1} parent=1 // pred_check_branch
      %21 = sbr.rel (0) target = $region17
    $region16: #{tpu_custom_call.1} parent=1 // pred_region
      _
    $region17: #{tpu_custom_call.1} parent=1 // pred_fallthru
      _
    // Predicated region
    $region18: #{tpu_custom_call.1} parent=1 // pred_check
      _
    $region19: #{tpu_custom_call.1} parent=1 // pred_check_branch
      %23 = sbr.rel (0) target = $region21
    $region20: #{tpu_custom_call.1} parent=1 // pred_region
      _
    $region21: #{tpu_custom_call.1} parent=1 // pred_fallthru
      _
    // Predicated region
    $region22: #{tpu_custom_call.1} parent=1 // pred_check
      _
    $region23: #{tpu_custom_call.1} parent=1 // pred_check_branch
      %25 = sbr.rel (0) target = $region25
    $region24: #{tpu_custom_call.1} parent=1 // pred_region
      _
    $region25: #{tpu_custom_call.1} parent=1 // pred_fallthru
      _
    // Predicated region
    $region26: #{tpu_custom_call.1} parent=1 // pred_check
      _
    $region27: #{tpu_custom_call.1} parent=1 // pred_check_branch
      %27 = sbr.rel (0) target = $region29
    $region28: #{tpu_custom_call.1} parent=1 // pred_region
      _
    $region29: #{tpu_custom_call.1} parent=1 // pred_fallthru
      _
    // Predicated region
    $region30: #{tpu_custom_call.1} parent=1 // pred_check
      _
    $region31: #{tpu_custom_call.1} parent=1 // pred_check_branch
      %29 = sbr.rel (0) target = $region33
    $region32: #{tpu_custom_call.1} parent=1 // pred_region
      _
    $region33: #{tpu_custom_call.1} parent=1 // pred_fallthru
      _
    %v30 = vld [vmem:[%s0] sm:$0xff]
    %v31 = vld [vmem:[%s0 + $0x8] sm:$0xff]
    %v32 = vld [vmem:[%s0 + $0x10] sm:$0xff]
    %v33 = vld [vmem:[%s0 + $0x18] sm:$0xff]
    %v34 = vld [vmem:[%s0 + $0x20] sm:$0xff]
    %v35 = vld [vmem:[%s0 + $0x28] sm:$0xff]
    %v36 = vld [vmem:[%s0 + $0x30] sm:$0xff]
    %v37 = vld [vmem:[%s0 + $0x38] sm:$0xff]
    %vm38 = vcmask 31744
    %v39 = vsel %vm38, %v30, 0.0
    %v40 = vsel %vm38, %v31, 0.0
    %v41 = vadd.f32 %v39, %v40
    %v42 = vsel %vm38, %v32, 0.0
    %v43 = vadd.f32 %v41, %v42
    %v44 = vsel %vm38, %v33, 0.0
    %v45 = vadd.f32 %v43, %v44
    %v46 = vsel %vm38, %v34, 0.0
    %v47 = vadd.f32 %v45, %v46
    %v48 = vsel %vm38, %v35, 0.0
    %v49 = vadd.f32 %v47, %v48
    %v50 = vsel %vm38, %v36, 0.0
    %v51 = vadd.f32 %v49, %v50
    %v52 = vsel %vm38, %v37, 0.0
    %v53 = vadd.f32 %v51, %v52
    %v54 = vrot.slane %v53, 4
    %v55 = vadd.f32 %v53, %v54
    %v56 = vrot.slane %v55, 2
    %v57 = vadd.f32 %v55, %v56
    %v58 = vrot.slane %v57, 1
    %v59 = vadd.f32 %v57, %v58
    %v60 = vmul.f32 %v30, %v30
    %v61 = vmul.f32 %v31, %v31
    %v62 = vmul.f32 %v32, %v32
    %v63 = vmul.f32 %v33, %v33
    %v64 = vmul.f32 %v34, %v34
    %v65 = vmul.f32 %v35, %v35
    %v66 = vmul.f32 %v36, %v36
    %v67 = vmul.f32 %v37, %v37
    %v68 = vsel %vm38, %v60, 0.0
    %v69 = vsel %vm38, %v61, 0.0
    %v70 = vadd.f32 %v68, %v69
    %v71 = vsel %vm38, %v62, 0.0
    %v72 = vadd.f32 %v70, %v71
    %v73 = vsel %vm38, %v63, 0.0
    %v74 = vadd.f32 %v72, %v73
    %v75 = vsel %vm38, %v64, 0.0
    %v76 = vadd.f32 %v74, %v75
    %v77 = vsel %vm38, %v65, 0.0
    %v78 = vadd.f32 %v76, %v77
    %v79 = vsel %vm38, %v66, 0.0
    %v80 = vadd.f32 %v78, %v79
    %v81 = vsel %vm38, %v67, 0.0
    %v82 = vadd.f32 %v80, %v81
    %v83 = vrot.slane %v82, 4
    %v84 = vadd.f32 %v82, %v83
    %v85 = vrot.slane %v84, 2
    %v86 = vadd.f32 %v84, %v85
    %v87 = vrot.slane %v86, 1
    %v88 = vadd.f32 %v86, %v87
    %v89 = vmul.f32 %v59, 0.0625
    %v90 = vmul.f32 %v88, 0.0625
    %v91 = vmul.f32 %v89, %v89
    %v92 = vsub.f32 %v90, %v91
    %v93 = vmax.f32 %v92, 0.0
    %v94 = vadd.f32 %v93, 1e-05
    %v95 = vrsqrt.pop %v94
    %v96 = vld [vmem:[%s1] sm:$0x1]
    %v97 = vmul.f32 %v95, %v96
    %v98 = vsub.f32 %v30, %v89
    %v99 = vsub.f32 %v31, %v89
    %v100 = vsub.f32 %v32, %v89
    %v101 = vsub.f32 %v33, %v89
    %v102 = vsub.f32 %v34, %v89
    %v103 = vsub.f32 %v35, %v89
    %v104 = vsub.f32 %v36, %v89
    %v105 = vsub.f32 %v37, %v89
    %v106 = vlaneseq
    %v107 = vshrl.u32 %v106, 7
    %v108 = vsub.s32 0, %v107
    %v109 = vrot.slane %v97, %v108
    %v110 = vmul.f32 %v98, %v109
    %v111 = vmul.f32 %v99, %v109
    %v112 = vmul.f32 %v100, %v109
    %v113 = vmul.f32 %v101, %v109
    %v114 = vmul.f32 %v102, %v109
    %v115 = vmul.f32 %v103, %v109
    %v116 = vmul.f32 %v104, %v109
    %v117 = vmul.f32 %v105, %v109
    %v118 = vld [vmem:[%s2] sm:$0x1]
    %v120 = vlaneseq
    %v121 = vshrl.u32 %v120, 7
    %v122 = vsub.s32 0, %v121
    %v123 = vrot.slane %v118, %v122
    %v125 = vadd.f32 %v110, %v123
    %v126 = vadd.f32 %v111, %v123
    %v127 = vadd.f32 %v112, %v123
    %v128 = vadd.f32 %v113, %v123
    %v129 = vadd.f32 %v114, %v123
    %v130 = vadd.f32 %v115, %v123
    %v131 = vadd.f32 %v116, %v123
    %v132 = vadd.f32 %v117, %v123
    %v133 = vld [vmem:[%s3] sm:$0xf]
    %v134 = vld [vmem:[%s5] sm:$0x1]
    %v136 = vlaneseq
    %v137 = vshrl.u32 %v136, 7
    %v138 = vsub.s32 0, %v137
    %v139 = vrot.slane %v134, %v138
    %v142 = vsel %vm38, %v125, 0
    %v145 = vsel %vm38, %v126, 0
    %v148 = vsel %vm38, %v127, 0
    %v151 = vsel %vm38, %v128, 0
    %v154 = vsel %vm38, %v129, 0
    %v157 = vsel %vm38, %v130, 0
    %v160 = vsel %vm38, %v131, 0
    %v163 = vsel %vm38, %v132, 0
    %vm165 = vcmask 1043456
    %v167 = vsel %vm165, %v133, 0
    %169 = vmatprep.subr.mxu0 0.0
    %170 = vmatpush1.msra.mxu0 %v167
    %171 = vmatprep.subr.mxu0 0.0
    %172 = vmatpush1.msra.mxu0 0.0
    %173 = vmatprep.subr.mxu0 0.0
    %174 = vmatpush1.msra.mxu0 0.0
    %175 = vmatprep.subr.mxu0 0.0
    %176 = vmatpush1.msra.mxu0 0.0
    %177 = vmatprep.subr.mxu0 0.0
    %178 = vmatpush1.msra.mxu0 0.0
    %179 = vmatprep.subr.mxu0 0.0
    %180 = vmatpush1.msra.mxu0 0.0
    %181 = vmatprep.subr.mxu0 0.0
    %182 = vmatpush1.msra.mxu0 0.0
    %183 = vmatprep.subr.mxu0 0.0
    %184 = vmatpush1.msra.mxu0 0.0
    %185 = vmatprep.subr.mxu0 0.0
    %186 = vmatpush1.msra.mxu0 0.0
    %187 = vmatprep.subr.mxu0 0.0
    %188 = vmatpush1.msra.mxu0 0.0
    %189 = vmatprep.subr.mxu0 0.0
    %190 = vmatpush1.msra.mxu0 0.0
    %191 = vmatprep.subr.mxu0 0.0
    %192 = vmatpush1.msra.mxu0 0.0
    %193 = vmatprep.subr.mxu0 0.0
    %194 = vmatpush1.msra.mxu0 0.0
    %195 = vmatprep.subr.mxu0 0.0
    %196 = vmatpush1.msra.mxu0 0.0
    %197 = vmatprep.subr.mxu0 0.0
    %198 = vmatpush1.msra.mxu0 0.0
    %199 = vmatprep.subr.mxu0 0.0
    %200 = vmatpush1.msra.mxu0 0.0
    %201 = vmatprep.subr.mxu0 0.0
    %202 = vmatpush1.msra.mxu0 0.0
    %203 = vmatprep.subr.mxu0 0.0
    %204 = vmatpush1.msra.mxu0 0.0
    %205 = vmatprep.subr.mxu0 0.0
    %206 = vmatpush1.msra.mxu0 0.0
    %207 = vmatprep.subr.mxu0 0.0
    %208 = vmatpush1.msra.mxu0 0.0
    %209 = vmatprep.subr.mxu0 0.0
    %210 = vmatpush1.msra.mxu0 0.0
    %211 = vmatprep.subr.mxu0 0.0
    %212 = vmatpush1.msra.mxu0 0.0
    %213 = vmatprep.subr.mxu0 0.0
    %214 = vmatpush1.msra.mxu0 0.0
    %215 = vmatprep.subr.mxu0 0.0
    %216 = vmatpush1.msra.mxu0 0.0
    %217 = vmatprep.subr.mxu0 0.0
    %218 = vmatpush1.msra.mxu0 0.0
    %219 = vmatprep.subr.mxu0 0.0
    %220 = vmatpush1.msra.mxu0 0.0
    %221 = vmatprep.subr.mxu0 0.0
    %222 = vmatpush1.msra.mxu0 0.0
    %223 = vmatprep.subr.mxu0 0.0
    %224 = vmatpush1.msra.mxu0 0.0
    %225 = vmatprep.subr.mxu0 0.0
    %226 = vmatpush1.msra.mxu0 0.0
    %227 = vmatprep.subr.mxu0 0.0
    %228 = vmatpush1.msra.mxu0 0.0
    %229 = vmatprep.subr.mxu0 0.0
    %230 = vmatpush1.msra.mxu0 0.0
    %231 = vmatprep.subr.mxu0 0.0
    %232 = vmatpush1.msra.mxu0 0.0
    %233 = vmatprep.mubr.f32.mxu0 0.0
    %234 = vmatmul.mubr.f32.gmra.mrb[0].mxu0 %v142
    %v235 = vpop.f32.mrb[0].mxu0
    %v236 = vadd.f32 %v139, %v235
    %v237 = vpop.f32.mrb[0].mxu0
    %238 = vmatprep.mubr.f32.mxu0 0.0
    %239 = vmatmul.mubr.f32.gmra.mrb[0].mxu0 %v145
    %v240 = vpop.f32.mrb[0].mxu0
    %v241 = vadd.f32 %v139, %v240
    %v242 = vpop.f32.mrb[0].mxu0
    %243 = vmatprep.mubr.f32.mxu0 0.0
    %244 = vmatmul.mubr.f32.gmra.mrb[0].mxu0 %v148
    %v245 = vpop.f32.mrb[0].mxu0
    %v246 = vadd.f32 %v139, %v245
    %v247 = vpop.f32.mrb[0].mxu0
    %248 = vmatprep.mubr.f32.mxu0 0.0
    %249 = vmatmul.mubr.f32.gmra.mrb[0].mxu0 %v151
    %v250 = vpop.f32.mrb[0].mxu0
    %v251 = vadd.f32 %v139, %v250
    %v252 = vpop.f32.mrb[0].mxu0
    %253 = vmatprep.mubr.f32.mxu0 0.0
    %254 = vmatmul.mubr.f32.gmra.mrb[0].mxu0 %v154
    %v255 = vpop.f32.mrb[0].mxu0
    %v256 = vadd.f32 %v139, %v255
    %v257 = vpop.f32.mrb[0].mxu0
    %258 = vmatprep.mubr.f32.mxu0 0.0
    %259 = vmatmul.mubr.f32.gmra.mrb[0].mxu0 %v157
    %v260 = vpop.f32.mrb[0].mxu0
    %v261 = vadd.f32 %v139, %v260
    %v262 = vpop.f32.mrb[0].mxu0
    %263 = vmatprep.mubr.f32.mxu0 0.0
    %264 = vmatmul.mubr.f32.gmra.mrb[0].mxu0 %v160
    %v265 = vpop.f32.mrb[0].mxu0
    %v266 = vadd.f32 %v139, %v265
    %v267 = vpop.f32.mrb[0].mxu0
    %268 = vmatprep.mubr.f32.mxu0 0.0
    %269 = vmatmul.mubr.f32.gmra.mrb[0].mxu0 %v163
    %v270 = vpop.f32.mrb[0].mxu0
    %v271 = vadd.f32 %v139, %v270
    %v272 = vpop.f32.mrb[0].mxu0
    %273 = vdwg.mxu0
    %274 = vst [vmem:[#allocation2] sm:$0xff] %v236
    %275 = vst [vmem:[#allocation2 + $0x8] sm:$0xff] %v241
    %276 = vst [vmem:[#allocation2 + $0x10] sm:$0xff] %v246
    %277 = vst [vmem:[#allocation2 + $0x18] sm:$0xff] %v251
    %278 = vst [vmem:[#allocation2 + $0x20] sm:$0xff] %v256
    %279 = vst [vmem:[#allocation2 + $0x28] sm:$0xff] %v261
    %280 = vst [vmem:[#allocation2 + $0x30] sm:$0xff] %v266
    %281 = vst [vmem:[#allocation2 + $0x38] sm:$0xff] %v271
    %v282 = vld [vmem:[%s4] sm:$0xff]
    %v283 = vld [vmem:[%s4 + $0x8] sm:$0xff]
    %v284 = vld [vmem:[%s4 + $0x10] sm:$0xff]
    %v285 = vld [vmem:[%s4 + $0x18] sm:$0xff]
    %v286 = vld [vmem:[%s6] sm:$0xff]
    %v287 = vld [vmem:[%s6 + $0x8] sm:$0xff]
    %v288 = vld [vmem:[%s6 + $0x10] sm:$0xff]
    %v289 = vld [vmem:[%s6 + $0x18] sm:$0xff]
    %v290 = vld [vmem:[%s7] sm:$0x1]
    %v291 = vld [vmem:[#allocation2] sm:$0xff]
    %vm292 = vcmask 261120
    %v294 = vsel %vm292, 0.0, 0
    %296 = vmatprep.subr.mxu0 0.0
    %297 = vmatpush1.msra.mxu0 %v282
    %298 = vmatprep.subr.mxu0 0.0
    %299 = vmatpush1.msra.mxu0 %v283
    %300 = vmatprep.subr.mxu0 0.0
    %301 = vmatpush1.msra.mxu0 %v284
    %302 = vmatprep.subr.mxu0 0.0
    %303 = vmatpush1.msra.mxu0 %v285
    %304 = vmatprep.subr.mxu0 0.0
    %305 = vmatpush1.msra.mxu0 0.0
    %306 = vmatprep.subr.mxu0 0.0
    %307 = vmatpush1.msra.mxu0 0.0
    %308 = vmatprep.subr.mxu0 0.0
    %309 = vmatpush1.msra.mxu0 0.0
    %310 = vmatprep.subr.mxu0 0.0
    %311 = vmatpush1.msra.mxu0 0.0
    %312 = vmatprep.subr.mxu0 0.0
    %313 = vmatpush1.msra.mxu0 0.0
    %314 = vmatprep.subr.mxu0 0.0
    %315 = vmatpush1.msra.mxu0 0.0
    %316 = vmatprep.subr.mxu0 0.0
    %317 = vmatpush1.msra.mxu0 0.0
    %318 = vmatprep.subr.mxu0 0.0
    %319 = vmatpush1.msra.mxu0 0.0
    %320 = vmatprep.subr.mxu0 0.0
    %321 = vmatpush1.msra.mxu0 0.0
    %322 = vmatprep.subr.mxu0 0.0
    %323 = vmatpush1.msra.mxu0 0.0
    %324 = vmatprep.subr.mxu0 0.0
    %325 = vmatpush1.msra.mxu0 0.0
    %326 = vmatprep.subr.mxu0 0.0
    %327 = vmatpush1.msra.mxu0 0.0
    %328 = vmatprep.subr.mxu0 0.0
    %329 = vmatpush1.msra.mxu0 0.0
    %330 = vmatprep.subr.mxu0 0.0
    %331 = vmatpush1.msra.mxu0 0.0
    %332 = vmatprep.subr.mxu0 0.0
    %333 = vmatpush1.msra.mxu0 0.0
    %334 = vmatprep.subr.mxu0 0.0
    %335 = vmatpush1.msra.mxu0 0.0
    %336 = vmatprep.subr.mxu0 0.0
    %337 = vmatpush1.msra.mxu0 0.0
    %338 = vmatprep.subr.mxu0 0.0
    %339 = vmatpush1.msra.mxu0 0.0
    %340 = vmatprep.subr.mxu0 0.0
    %341 = vmatpush1.msra.mxu0 0.0
    %342 = vmatprep.subr.mxu0 0.0
    %343 = vmatpush1.msra.mxu0 0.0
    %344 = vmatprep.subr.mxu0 0.0
    %345 = vmatpush1.msra.mxu0 0.0
    %346 = vmatprep.subr.mxu0 0.0
    %347 = vmatpush1.msra.mxu0 0.0
    %348 = vmatprep.subr.mxu0 0.0
    %349 = vmatpush1.msra.mxu0 0.0
    %350 = vmatprep.subr.mxu0 0.0
    %351 = vmatpush1.msra.mxu0 0.0
    %352 = vmatprep.subr.mxu0 0.0
    %353 = vmatpush1.msra.mxu0 0.0
    %354 = vmatprep.subr.mxu0 0.0
    %355 = vmatpush1.msra.mxu0 0.0
    %356 = vmatprep.subr.mxu0 0.0
    %357 = vmatpush1.msra.mxu0 0.0
    %358 = vmatprep.subr.mxu0 0.0
    %359 = vmatpush1.msra.mxu0 0.0
    %360 = vmatprep.mubr.f32.mxu0 0.0
    %361 = vmatmul.mubr.f32.gmra.mrb[0].mxu0 %v294
    %v362 = vpop.f32.mrb[0].mxu0
    %v363 = vadd.f32 0.0, %v362
    %v364 = vpop.f32.mrb[0].mxu0
    %365 = vdwg.mxu0
    %v366 = vadd.f32 %v291, %v363
    %v367 = vxor.u32 %v366, 2147483648
    %v368 = vmul.f32 %v367, 1.442695
    %v369 = vpow.pop %v368
    %v370 = vadd.f32 %v369, 1.0
    %v371 = vrcp.pop %v370
    %v372 = vmul.f32 1.0, %v371
    %v373 = vmul.f32 %v372, 2.0
    %v374 = vsub.f32 %v373, 1.0
    %v375 = vmul.f32 %v372, 0.0
    %377 = vrot.lane.b32.xlu0 %v374, 64
    %v378 = vpop.permute.xlu0 %377
    %v380 = vmul.f32 %v372, %v378
    %382 = vrot.lane.b32.xlu0 %v380, 32
    %v383 = vpop.permute.xlu0 %382
    %v385 = vadd.f32 %v375, %v383
    %v386 = vtanh.pop %v385
    %388 = vrot.lane.b32.xlu0 %v386, 64
    %v389 = vpop.permute.xlu0 %388
    %v391 = vmul.f32 %v372, %v389
    %v393 = vlaneseq
    %v394 = vshrl.u32 %v393, 7
    %v395 = vsub.s32 0, %v394
    %v396 = vrot.slane %v290, %v395
    %399 = vrot.lane.b32.xlu0 %v391, 32
    %v400 = vpop.permute.xlu0 %399
    %v401 = vsel %vm292, %v400, 0
    %403 = vmatprep.subr.mxu0 0.0
    %404 = vmatpush1.msra.mxu0 %v286
    %405 = vmatprep.subr.mxu0 0.0
    %406 = vmatpush1.msra.mxu0 %v287
    %407 = vmatprep.subr.mxu0 0.0
    %408 = vmatpush1.msra.mxu0 %v288
    %409 = vmatprep.subr.mxu0 0.0
    %410 = vmatpush1.msra.mxu0 %v289
    %411 = vmatprep.subr.mxu0 0.0
    %412 = vmatpush1.msra.mxu0 0.0
    %413 = vmatprep.subr.mxu0 0.0
    %414 = vmatpush1.msra.mxu0 0.0
    %415 = vmatprep.subr.mxu0 0.0
    %416 = vmatpush1.msra.mxu0 0.0
    %417 = vmatprep.subr.mxu0 0.0
    %418 = vmatpush1.msra.mxu0 0.0
    %419 = vmatprep.subr.mxu0 0.0
    %420 = vmatpush1.msra.mxu0 0.0
    %421 = vmatprep.subr.mxu0 0.0
    %422 = vmatpush1.msra.mxu0 0.0
    %423 = vmatprep.subr.mxu0 0.0
    %424 = vmatpush1.msra.mxu0 0.0
    %425 = vmatprep.subr.mxu0 0.0
    %426 = vmatpush1.msra.mxu0 0.0
    %427 = vmatprep.subr.mxu0 0.0
    %428 = vmatpush1.msra.mxu0 0.0
    %429 = vmatprep.subr.mxu0 0.0
    %430 = vmatpush1.msra.mxu0 0.0
    %431 = vmatprep.subr.mxu0 0.0
    %432 = vmatpush1.msra.mxu0 0.0
    %433 = vmatprep.subr.mxu0 0.0
    %434 = vmatpush1.msra.mxu0 0.0
    %435 = vmatprep.subr.mxu0 0.0
    %436 = vmatpush1.msra.mxu0 0.0
    %437 = vmatprep.subr.mxu0 0.0
    %438 = vmatpush1.msra.mxu0 0.0
    %439 = vmatprep.subr.mxu0 0.0
    %440 = vmatpush1.msra.mxu0 0.0
    %441 = vmatprep.subr.mxu0 0.0
    %442 = vmatpush1.msra.mxu0 0.0
    %443 = vmatprep.subr.mxu0 0.0
    %444 = vmatpush1.msra.mxu0 0.0
    %445 = vmatprep.subr.mxu0 0.0
    %446 = vmatpush1.msra.mxu0 0.0
    %447 = vmatprep.subr.mxu0 0.0
    %448 = vmatpush1.msra.mxu0 0.0
    %449 = vmatprep.subr.mxu0 0.0
    %450 = vmatpush1.msra.mxu0 0.0
    %451 = vmatprep.subr.mxu0 0.0
    %452 = vmatpush1.msra.mxu0 0.0
    %453 = vmatprep.subr.mxu0 0.0
    %454 = vmatpush1.msra.mxu0 0.0
    %455 = vmatprep.subr.mxu0 0.0
    %456 = vmatpush1.msra.mxu0 0.0
    %457 = vmatprep.subr.mxu0 0.0
    %458 = vmatpush1.msra.mxu0 0.0
    %459 = vmatprep.subr.mxu0 0.0
    %460 = vmatpush1.msra.mxu0 0.0
    %461 = vmatprep.subr.mxu0 0.0
    %462 = vmatpush1.msra.mxu0 0.0
    %463 = vmatprep.subr.mxu0 0.0
    %464 = vmatpush1.msra.mxu0 0.0
    %465 = vmatprep.subr.mxu0 0.0
    %466 = vmatpush1.msra.mxu0 0.0
    %467 = vmatprep.mubr.f32.mxu0 0.0
    %468 = vmatmul.mubr.f32.gmra.mrb[0].mxu0 %v401
    %v469 = vpop.f32.mrb[0].mxu0
    %v470 = vadd.f32 %v396, %v469
    %v471 = vpop.f32.mrb[0].mxu0
    %472 = vdwg.mxu0
    %473 = vst [vmem:[#allocation3] sm:$0xff] %v470
    %s474 = scalar_lea.vmem [#allocation2], 8
    %v475 = vld [vmem:[%s474] sm:$0xff]
    %476 = vmatprep.subr.mxu0 0.0
    %477 = vmatpush1.msra.mxu0 %v282
    %478 = vmatprep.subr.mxu0 0.0
    %479 = vmatpush1.msra.mxu0 %v283
    %480 = vmatprep.subr.mxu0 0.0
    %481 = vmatpush1.msra.mxu0 %v284
    %482 = vmatprep.subr.mxu0 0.0
    %483 = vmatpush1.msra.mxu0 %v285
    %484 = vmatprep.subr.mxu0 0.0
    %485 = vmatpush1.msra.mxu0 0.0
    %486 = vmatprep.subr.mxu0 0.0
    %487 = vmatpush1.msra.mxu0 0.0
    %488 = vmatprep.subr.mxu0 0.0
    %489 = vmatpush1.msra.mxu0 0.0
    %490 = vmatprep.subr.mxu0 0.0
    %491 = vmatpush1.msra.mxu0 0.0
    %492 = vmatprep.subr.mxu0 0.0
    %493 = vmatpush1.msra.mxu0 0.0
    %494 = vmatprep.subr.mxu0 0.0
    %495 = vmatpush1.msra.mxu0 0.0
    %496 = vmatprep.subr.mxu0 0.0
    %497 = vmatpush1.msra.mxu0 0.0
    %498 = vmatprep.subr.mxu0 0.0
    %499 = vmatpush1.msra.mxu0 0.0
    %500 = vmatprep.subr.mxu0 0.0
    %501 = vmatpush1.msra.mxu0 0.0
    %502 = vmatprep.subr.mxu0 0.0
    %503 = vmatpush1.msra.mxu0 0.0
    %504 = vmatprep.subr.mxu0 0.0
    %505 = vmatpush1.msra.mxu0 0.0
    %506 = vmatprep.subr.mxu0 0.0
    %507 = vmatpush1.msra.mxu0 0.0
    %508 = vmatprep.subr.mxu0 0.0
    %509 = vmatpush1.msra.mxu0 0.0
    %510 = vmatprep.subr.mxu0 0.0
    %511 = vmatpush1.msra.mxu0 0.0
    %512 = vmatprep.subr.mxu0 0.0
    %513 = vmatpush1.msra.mxu0 0.0
    %514 = vmatprep.subr.mxu0 0.0
    %515 = vmatpush1.msra.mxu0 0.0
    %516 = vmatprep.subr.mxu0 0.0
    %517 = vmatpush1.msra.mxu0 0.0
    %518 = vmatprep.subr.mxu0 0.0
    %519 = vmatpush1.msra.mxu0 0.0
    %520 = vmatprep.subr.mxu0 0.0
    %521 = vmatpush1.msra.mxu0 0.0
    %522 = vmatprep.subr.mxu0 0.0
    %523 = vmatpush1.msra.mxu0 0.0
    %524 = vmatprep.subr.mxu0 0.0
    %525 = vmatpush1.msra.mxu0 0.0
    %526 = vmatprep.subr.mxu0 0.0
    %527 = vmatpush1.msra.mxu0 0.0
    %528 = vmatprep.subr.mxu0 0.0
    %529 = vmatpush1.msra.mxu0 0.0
    %530 = vmatprep.subr.mxu0 0.0
    %531 = vmatpush1.msra.mxu0 0.0
    %532 = vmatprep.subr.mxu0 0.0
    %533 = vmatpush1.msra.mxu0 0.0
    %534 = vmatprep.subr.mxu0 0.0
    %535 = vmatpush1.msra.mxu0 0.0
    %536 = vmatprep.subr.mxu0 0.0
    %537 = vmatpush1.msra.mxu0 0.0
    %538 = vmatprep.subr.mxu0 0.0
    %539 = vmatpush1.msra.mxu0 0.0
    %540 = vmatprep.mubr.f32.mxu0 0.0
    %541 = vmatmul.mubr.f32.gmra.mrb[0].mxu0 %v401
    %v542 = vpop.f32.mrb[0].mxu0
    %v543 = vadd.f32 0.0, %v542
    %v544 = vpop.f32.mrb[0].mxu0
    %545 = vdwg.mxu0
    %v546 = vadd.f32 %v475, %v543
    %v547 = vxor.u32 %v546, 2147483648
    %v548 = vmul.f32 %v547, 1.442695
    %v549 = vpow.pop %v548
    %v550 = vadd.f32 %v549, 1.0
    %v551 = vrcp.pop %v550
    %v552 = vmul.f32 1.0, %v551
    %v553 = vmul.f32 %v552, 2.0
    %v554 = vsub.f32 %v553, 1.0
    %v555 = vmul.f32 %v552, %v385
    %557 = vrot.lane.b32.xlu0 %v554, 64
    %v558 = vpop.permute.xlu0 %557
    %v560 = vmul.f32 %v552, %v558
    %562 = vrot.lane.b32.xlu0 %v560, 32
    %v563 = vpop.permute.xlu0 %562
    %v565 = vadd.f32 %v555, %v563
    %v566 = vtanh.pop %v565
    %568 = vrot.lane.b32.xlu0 %v566, 64
    %v569 = vpop.permute.xlu0 %568
    %v571 = vmul.f32 %v552, %v569
    %573 = vrot.lane.b32.xlu0 %v571, 32
    %v574 = vpop.permute.xlu0 %573
    %v575 = vsel %vm292, %v574, 0
    %577 = vmatprep.subr.mxu0 0.0
    %578 = vmatpush1.msra.mxu0 %v286
    %579 = vmatprep.subr.mxu0 0.0
    %580 = vmatpush1.msra.mxu0 %v287
    %581 = vmatprep.subr.mxu0 0.0
    %582 = vmatpush1.msra.mxu0 %v288
    %583 = vmatprep.subr.mxu0 0.0
    %584 = vmatpush1.msra.mxu0 %v289
    %585 = vmatprep.subr.mxu0 0.0
    %586 = vmatpush1.msra.mxu0 0.0
    %587 = vmatprep.subr.mxu0 0.0
    %588 = vmatpush1.msra.mxu0 0.0
    %589 = vmatprep.subr.mxu0 0.0
    %590 = vmatpush1.msra.mxu0 0.0
    %591 = vmatprep.subr.mxu0 0.0
    %592 = vmatpush1.msra.mxu0 0.0
    %593 = vmatprep.subr.mxu0 0.0
    %594 = vmatpush1.msra.mxu0 0.0
    %595 = vmatprep.subr.mxu0 0.0
    %596 = vmatpush1.msra.mxu0 0.0
    %597 = vmatprep.subr.mxu0 0.0
    %598 = vmatpush1.msra.mxu0 0.0
    %599 = vmatprep.subr.mxu0 0.0
    %600 = vmatpush1.msra.mxu0 0.0
    %601 = vmatprep.subr.mxu0 0.0
    %602 = vmatpush1.msra.mxu0 0.0
    %603 = vmatprep.subr.mxu0 0.0
    %604 = vmatpush1.msra.mxu0 0.0
    %605 = vmatprep.subr.mxu0 0.0
    %606 = vmatpush1.msra.mxu0 0.0
    %607 = vmatprep.subr.mxu0 0.0
    %608 = vmatpush1.msra.mxu0 0.0
    %609 = vmatprep.subr.mxu0 0.0
    %610 = vmatpush1.msra.mxu0 0.0
    %611 = vmatprep.subr.mxu0 0.0
    %612 = vmatpush1.msra.mxu0 0.0
    %613 = vmatprep.subr.mxu0 0.0
    %614 = vmatpush1.msra.mxu0 0.0
    %615 = vmatprep.subr.mxu0 0.0
    %616 = vmatpush1.msra.mxu0 0.0
    %617 = vmatprep.subr.mxu0 0.0
    %618 = vmatpush1.msra.mxu0 0.0
    %619 = vmatprep.subr.mxu0 0.0
    %620 = vmatpush1.msra.mxu0 0.0
    %621 = vmatprep.subr.mxu0 0.0
    %622 = vmatpush1.msra.mxu0 0.0
    %623 = vmatprep.subr.mxu0 0.0
    %624 = vmatpush1.msra.mxu0 0.0
    %625 = vmatprep.subr.mxu0 0.0
    %626 = vmatpush1.msra.mxu0 0.0
    %627 = vmatprep.subr.mxu0 0.0
    %628 = vmatpush1.msra.mxu0 0.0
    %629 = vmatprep.subr.mxu0 0.0
    %630 = vmatpush1.msra.mxu0 0.0
    %631 = vmatprep.subr.mxu0 0.0
    %632 = vmatpush1.msra.mxu0 0.0
    %633 = vmatprep.subr.mxu0 0.0
    %634 = vmatpush1.msra.mxu0 0.0
    %635 = vmatprep.subr.mxu0 0.0
    %636 = vmatpush1.msra.mxu0 0.0
    %637 = vmatprep.subr.mxu0 0.0
    %638 = vmatpush1.msra.mxu0 0.0
    %639 = vmatprep.subr.mxu0 0.0
    %640 = vmatpush1.msra.mxu0 0.0
    %641 = vmatprep.mubr.f32.mxu0 0.0
    %642 = vmatmul.mubr.f32.gmra.mrb[0].mxu0 %v575
    %v643 = vpop.f32.mrb[0].mxu0
    %v644 = vadd.f32 %v396, %v643
    %v645 = vpop.f32.mrb[0].mxu0
    %646 = vdwg.mxu0
    %s647 = scalar_lea.vmem [#allocation3], 8
    %648 = vst [vmem:[%s647] sm:$0xff] %v644
    %s649 = scalar_lea.vmem [#allocation2], 16
    %v650 = vld [vmem:[%s649] sm:$0xff]
    %651 = vmatprep.subr.mxu0 0.0
    %652 = vmatpush1.msra.mxu0 %v282
    %653 = vmatprep.subr.mxu0 0.0
    %654 = vmatpush1.msra.mxu0 %v283
    %655 = vmatprep.subr.mxu0 0.0
    %656 = vmatpush1.msra.mxu0 %v284
    %657 = vmatprep.subr.mxu0 0.0
    %658 = vmatpush1.msra.mxu0 %v285
    %659 = vmatprep.subr.mxu0 0.0
    %660 = vmatpush1.msra.mxu0 0.0
    %661 = vmatprep.subr.mxu0 0.0
    %662 = vmatpush1.msra.mxu0 0.0
    %663 = vmatprep.subr.mxu0 0.0
    %664 = vmatpush1.msra.mxu0 0.0
    %665 = vmatprep.subr.mxu0 0.0
    %666 = vmatpush1.msra.mxu0 0.0
    %667 = vmatprep.subr.mxu0 0.0
    %668 = vmatpush1.msra.mxu0 0.0
    %669 = vmatprep.subr.mxu0 0.0
    %670 = vmatpush1.msra.mxu0 0.0
    %671 = vmatprep.subr.mxu0 0.0
    %672 = vmatpush1.msra.mxu0 0.0
    %673 = vmatprep.subr.mxu0 0.0
    %674 = vmatpush1.msra.mxu0 0.0
    %675 = vmatprep.subr.mxu0 0.0
    %676 = vmatpush1.msra.mxu0 0.0
    %677 = vmatprep.subr.mxu0 0.0
    %678 = vmatpush1.msra.mxu0 0.0
    %679 = vmatprep.subr.mxu0 0.0
    %680 = vmatpush1.msra.mxu0 0.0
    %681 = vmatprep.subr.mxu0 0.0
    %682 = vmatpush1.msra.mxu0 0.0
    %683 = vmatprep.subr.mxu0 0.0
    %684 = vmatpush1.msra.mxu0 0.0
    %685 = vmatprep.subr.mxu0 0.0
    %686 = vmatpush1.msra.mxu0 0.0
    %687 = vmatprep.subr.mxu0 0.0
    %688 = vmatpush1.msra.mxu0 0.0
    %689 = vmatprep.subr.mxu0 0.0
    %690 = vmatpush1.msra.mxu0 0.0
    %691 = vmatprep.subr.mxu0 0.0
    %692 = vmatpush1.msra.mxu0 0.0
    %693 = vmatprep.subr.mxu0 0.0
    %694 = vmatpush1.msra.mxu0 0.0
    %695 = vmatprep.subr.mxu0 0.0
    %696 = vmatpush1.msra.mxu0 0.0
    %697 = vmatprep.subr.mxu0 0.0
    %698 = vmatpush1.msra.mxu0 0.0
    %699 = vmatprep.subr.mxu0 0.0
    %700 = vmatpush1.msra.mxu0 0.0
    %701 = vmatprep.subr.mxu0 0.0
    %702 = vmatpush1.msra.mxu0 0.0
    %703 = vmatprep.subr.mxu0 0.0
    %704 = vmatpush1.msra.mxu0 0.0
    %705 = vmatprep.subr.mxu0 0.0
    %706 = vmatpush1.msra.mxu0 0.0
    %707 = vmatprep.subr.mxu0 0.0
    %708 = vmatpush1.msra.mxu0 0.0
    %709 = vmatprep.subr.mxu0 0.0
    %710 = vmatpush1.msra.mxu0 0.0
    %711 = vmatprep.subr.mxu0 0.0
    %712 = vmatpush1.msra.mxu0 0.0
    %713 = vmatprep.subr.mxu0 0.0
    %714 = vmatpush1.msra.mxu0 0.0
    %715 = vmatprep.mubr.f32.mxu0 0.0
    %716 = vmatmul.mubr.f32.gmra.mrb[0].mxu0 %v575
    %v717 = vpop.f32.mrb[0].mxu0
    %v718 = vadd.f32 0.0, %v717
    %v719 = vpop.f32.mrb[0].mxu0
    %720 = vdwg.mxu0
    %v721 = vadd.f32 %v650, %v718
    %v722 = vxor.u32 %v721, 2147483648
    %v723 = vmul.f32 %v722, 1.442695
    %v724 = vpow.pop %v723
    %v725 = vadd.f32 %v724, 1.0
    %v726 = vrcp.pop %v725
    %v727 = vmul.f32 1.0, %v726
    %v728 = vmul.f32 %v727, 2.0
    %v729 = vsub.f32 %v728, 1.0
    %v730 = vmul.f32 %v727, %v565
    %732 = vrot.lane.b32.xlu0 %v729, 64
    %v733 = vpop.permute.xlu0 %732
    %v735 = vmul.f32 %v727, %v733
    %737 = vrot.lane.b32.xlu0 %v735, 32
    %v738 = vpop.permute.xlu0 %737
    %v740 = vadd.f32 %v730, %v738
    %v741 = vtanh.pop %v740
    %743 = vrot.lane.b32.xlu0 %v741, 64
    %v744 = vpop.permute.xlu0 %743
    %v746 = vmul.f32 %v727, %v744
    %748 = vrot.lane.b32.xlu0 %v746, 32
    %v749 = vpop.permute.xlu0 %748
    %v750 = vsel %vm292, %v749, 0
    %752 = vmatprep.subr.mxu0 0.0
    %753 = vmatpush1.msra.mxu0 %v286
    %754 = vmatprep.subr.mxu0 0.0
    %755 = vmatpush1.msra.mxu0 %v287
    %756 = vmatprep.subr.mxu0 0.0
    %757 = vmatpush1.msra.mxu0 %v288
    %758 = vmatprep.subr.mxu0 0.0
    %759 = vmatpush1.msra.mxu0 %v289
    %760 = vmatprep.subr.mxu0 0.0
    %761 = vmatpush1.msra.mxu0 0.0
    %762 = vmatprep.subr.mxu0 0.0
    %763 = vmatpush1.msra.mxu0 0.0
    %764 = vmatprep.subr.mxu0 0.0
    %765 = vmatpush1.msra.mxu0 0.0
    %766 = vmatprep.subr.mxu0 0.0
    %767 = vmatpush1.msra.mxu0 0.0
    %768 = vmatprep.subr.mxu0 0.0
    %769 = vmatpush1.msra.mxu0 0.0
    %770 = vmatprep.subr.mxu0 0.0
    %771 = vmatpush1.msra.mxu0 0.0
    %772 = vmatprep.subr.mxu0 0.0
    %773 = vmatpush1.msra.mxu0 0.0
    %774 = vmatprep.subr.mxu0 0.0
    %775 = vmatpush1.msra.mxu0 0.0
    %776 = vmatprep.subr.mxu0 0.0
    %777 = vmatpush1.msra.mxu0 0.0
    %778 = vmatprep.subr.mxu0 0.0
    %779 = vmatpush1.msra.mxu0 0.0
    %780 = vmatprep.subr.mxu0 0.0
    %781 = vmatpush1.msra.mxu0 0.0
    %782 = vmatprep.subr.mxu0 0.0
    %783 = vmatpush1.msra.mxu0 0.0
    %784 = vmatprep.subr.mxu0 0.0
    %785 = vmatpush1.msra.mxu0 0.0
    %786 = vmatprep.subr.mxu0 0.0
    %787 = vmatpush1.msra.mxu0 0.0
    %788 = vmatprep.subr.mxu0 0.0
    %789 = vmatpush1.msra.mxu0 0.0
    %790 = vmatprep.subr.mxu0 0.0
    %791 = vmatpush1.msra.mxu0 0.0
    %792 = vmatprep.subr.mxu0 0.0
    %793 = vmatpush1.msra.mxu0 0.0
    %794 = vmatprep.subr.mxu0 0.0
    %795 = vmatpush1.msra.mxu0 0.0
    %796 = vmatprep.subr.mxu0 0.0
    %797 = vmatpush1.msra.mxu0 0.0
    %798 = vmatprep.subr.mxu0 0.0
    %799 = vmatpush1.msra.mxu0 0.0
    %800 = vmatprep.subr.mxu0 0.0
    %801 = vmatpush1.msra.mxu0 0.0
    %802 = vmatprep.subr.mxu0 0.0
    %803 = vmatpush1.msra.mxu0 0.0
    %804 = vmatprep.subr.mxu0 0.0
    %805 = vmatpush1.msra.mxu0 0.0
    %806 = vmatprep.subr.mxu0 0.0
    %807 = vmatpush1.msra.mxu0 0.0
    %808 = vmatprep.subr.mxu0 0.0
    %809 = vmatpush1.msra.mxu0 0.0
    %810 = vmatprep.subr.mxu0 0.0
    %811 = vmatpush1.msra.mxu0 0.0
    %812 = vmatprep.subr.mxu0 0.0
    %813 = vmatpush1.msra.mxu0 0.0
    %814 = vmatprep.subr.mxu0 0.0
    %815 = vmatpush1.msra.mxu0 0.0
    %816 = vmatprep.mubr.f32.mxu0 0.0
    %817 = vmatmul.mubr.f32.gmra.mrb[0].mxu0 %v750
    %v818 = vpop.f32.mrb[0].mxu0
    %v819 = vadd.f32 %v396, %v818
    %v820 = vpop.f32.mrb[0].mxu0
    %821 = vdwg.mxu0
    %s822 = scalar_lea.vmem [#allocation3], 16
    %823 = vst [vmem:[%s822] sm:$0xff] %v819
    %s824 = scalar_lea.vmem [#allocation2], 24
    %v825 = vld [vmem:[%s824] sm:$0xff]
    %826 = vmatprep.subr.mxu0 0.0
    %827 = vmatpush1.msra.mxu0 %v282
    %828 = vmatprep.subr.mxu0 0.0
    %829 = vmatpush1.msra.mxu0 %v283
    %830 = vmatprep.subr.mxu0 0.0
    %831 = vmatpush1.msra.mxu0 %v284
    %832 = vmatprep.subr.mxu0 0.0
    %833 = vmatpush1.msra.mxu0 %v285
    %834 = vmatprep.subr.mxu0 0.0
    %835 = vmatpush1.msra.mxu0 0.0
    %836 = vmatprep.subr.mxu0 0.0
    %837 = vmatpush1.msra.mxu0 0.0
    %838 = vmatprep.subr.mxu0 0.0
    %839 = vmatpush1.msra.mxu0 0.0
    %840 = vmatprep.subr.mxu0 0.0
    %841 = vmatpush1.msra.mxu0 0.0
    %842 = vmatprep.subr.mxu0 0.0
    %843 = vmatpush1.msra.mxu0 0.0
    %844 = vmatprep.subr.mxu0 0.0
    %845 = vmatpush1.msra.mxu0 0.0
    %846 = vmatprep.subr.mxu0 0.0
    %847 = vmatpush1.msra.mxu0 0.0
    %848 = vmatprep.subr.mxu0 0.0
    %849 = vmatpush1.msra.mxu0 0.0
    %850 = vmatprep.subr.mxu0 0.0
    %851 = vmatpush1.msra.mxu0 0.0
    %852 = vmatprep.subr.mxu0 0.0
    %853 = vmatpush1.msra.mxu0 0.0
    %854 = vmatprep.subr.mxu0 0.0
    %855 = vmatpush1.msra.mxu0 0.0
    %856 = vmatprep.subr.mxu0 0.0
    %857 = vmatpush1.msra.mxu0 0.0
    %858 = vmatprep.subr.mxu0 0.0
    %859 = vmatpush1.msra.mxu0 0.0
    %860 = vmatprep.subr.mxu0 0.0
    %861 = vmatpush1.msra.mxu0 0.0
    %862 = vmatprep.subr.mxu0 0.0
    %863 = vmatpush1.msra.mxu0 0.0
    %864 = vmatprep.subr.mxu0 0.0
    %865 = vmatpush1.msra.mxu0 0.0
    %866 = vmatprep.subr.mxu0 0.0
    %867 = vmatpush1.msra.mxu0 0.0
    %868 = vmatprep.subr.mxu0 0.0
    %869 = vmatpush1.msra.mxu0 0.0
    %870 = vmatprep.subr.mxu0 0.0
    %871 = vmatpush1.msra.mxu0 0.0
    %872 = vmatprep.subr.mxu0 0.0
    %873 = vmatpush1.msra.mxu0 0.0
    %874 = vmatprep.subr.mxu0 0.0
    %875 = vmatpush1.msra.mxu0 0.0
    %876 = vmatprep.subr.mxu0 0.0
    %877 = vmatpush1.msra.mxu0 0.0
    %878 = vmatprep.subr.mxu0 0.0
    %879 = vmatpush1.msra.mxu0 0.0
    %880 = vmatprep.subr.mxu0 0.0
    %881 = vmatpush1.msra.mxu0 0.0
    %882 = vmatprep.subr.mxu0 0.0
    %883 = vmatpush1.msra.mxu0 0.0
    %884 = vmatprep.subr.mxu0 0.0
    %885 = vmatpush1.msra.mxu0 0.0
    %886 = vmatprep.subr.mxu0 0.0
    %887 = vmatpush1.msra.mxu0 0.0
    %888 = vmatprep.subr.mxu0 0.0
    %889 = vmatpush1.msra.mxu0 0.0
    %890 = vmatprep.mubr.f32.mxu0 0.0
    %891 = vmatmul.mubr.f32.gmra.mrb[0].mxu0 %v750
    %v892 = vpop.f32.mrb[0].mxu0
    %v893 = vadd.f32 0.0, %v892
    %v894 = vpop.f32.mrb[0].mxu0
    %895 = vdwg.mxu0
    %v896 = vadd.f32 %v825, %v893
    %v897 = vxor.u32 %v896, 2147483648
    %v898 = vmul.f32 %v897, 1.442695
    %v899 = vpow.pop %v898
    %v900 = vadd.f32 %v899, 1.0
    %v901 = vrcp.pop %v900
    %v902 = vmul.f32 1.0, %v901
    %v903 = vmul.f32 %v902, 2.0
    %v904 = vsub.f32 %v903, 1.0
    %v905 = vmul.f32 %v902, %v740
    %907 = vrot.lane.b32.xlu0 %v904, 64
    %v908 = vpop.permute.xlu0 %907
    %v910 = vmul.f32 %v902, %v908
    %912 = vrot.lane.b32.xlu0 %v910, 32
    %v913 = vpop.permute.xlu0 %912
    %v915 = vadd.f32 %v905, %v913
    %v916 = vtanh.pop %v915
    %918 = vrot.lane.b32.xlu0 %v916, 64
    %v919 = vpop.permute.xlu0 %918
    %v921 = vmul.f32 %v902, %v919
    %923 = vrot.lane.b32.xlu0 %v921, 32
    %v924 = vpop.permute.xlu0 %923
    %v925 = vsel %vm292, %v924, 0
    %927 = vmatprep.subr.mxu0 0.0
    %928 = vmatpush1.msra.mxu0 %v286
    %929 = vmatprep.subr.mxu0 0.0
    %930 = vmatpush1.msra.mxu0 %v287
    %931 = vmatprep.subr.mxu0 0.0
    %932 = vmatpush1.msra.mxu0 %v288
    %933 = vmatprep.subr.mxu0 0.0
    %934 = vmatpush1.msra.mxu0 %v289
    %935 = vmatprep.subr.mxu0 0.0
    %936 = vmatpush1.msra.mxu0 0.0
    %937 = vmatprep.subr.mxu0 0.0
    %938 = vmatpush1.msra.mxu0 0.0
    %939 = vmatprep.subr.mxu0 0.0
    %940 = vmatpush1.msra.mxu0 0.0
    %941 = vmatprep.subr.mxu0 0.0
    %942 = vmatpush1.msra.mxu0 0.0
    %943 = vmatprep.subr.mxu0 0.0
    %944 = vmatpush1.msra.mxu0 0.0
    %945 = vmatprep.subr.mxu0 0.0
    %946 = vmatpush1.msra.mxu0 0.0
    %947 = vmatprep.subr.mxu0 0.0
    %948 = vmatpush1.msra.mxu0 0.0
    %949 = vmatprep.subr.mxu0 0.0
    %950 = vmatpush1.msra.mxu0 0.0
    %951 = vmatprep.subr.mxu0 0.0
    %952 = vmatpush1.msra.mxu0 0.0
    %953 = vmatprep.subr.mxu0 0.0
    %954 = vmatpush1.msra.mxu0 0.0
    %955 = vmatprep.subr.mxu0 0.0
    %956 = vmatpush1.msra.mxu0 0.0
    %957 = vmatprep.subr.mxu0 0.0
    %958 = vmatpush1.msra.mxu0 0.0
    %959 = vmatprep.subr.mxu0 0.0
    %960 = vmatpush1.msra.mxu0 0.0
    %961 = vmatprep.subr.mxu0 0.0
    %962 = vmatpush1.msra.mxu0 0.0
    %963 = vmatprep.subr.mxu0 0.0
    %964 = vmatpush1.msra.mxu0 0.0
    %965 = vmatprep.subr.mxu0 0.0
    %966 = vmatpush1.msra.mxu0 0.0
    %967 = vmatprep.subr.mxu0 0.0
    %968 = vmatpush1.msra.mxu0 0.0
    %969 = vmatprep.subr.mxu0 0.0
    %970 = vmatpush1.msra.mxu0 0.0
    %971 = vmatprep.subr.mxu0 0.0
    %972 = vmatpush1.msra.mxu0 0.0
    %973 = vmatprep.subr.mxu0 0.0
    %974 = vmatpush1.msra.mxu0 0.0
    %975 = vmatprep.subr.mxu0 0.0
    %976 = vmatpush1.msra.mxu0 0.0
    %977 = vmatprep.subr.mxu0 0.0
    %978 = vmatpush1.msra.mxu0 0.0
    %979 = vmatprep.subr.mxu0 0.0
    %980 = vmatpush1.msra.mxu0 0.0
    %981 = vmatprep.subr.mxu0 0.0
    %982 = vmatpush1.msra.mxu0 0.0
    %983 = vmatprep.subr.mxu0 0.0
    %984 = vmatpush1.msra.mxu0 0.0
    %985 = vmatprep.subr.mxu0 0.0
    %986 = vmatpush1.msra.mxu0 0.0
    %987 = vmatprep.subr.mxu0 0.0
    %988 = vmatpush1.msra.mxu0 0.0
    %989 = vmatprep.subr.mxu0 0.0
    %990 = vmatpush1.msra.mxu0 0.0
    %991 = vmatprep.mubr.f32.mxu0 0.0
    %992 = vmatmul.mubr.f32.gmra.mrb[0].mxu0 %v925
    %v993 = vpop.f32.mrb[0].mxu0
    %v994 = vadd.f32 %v396, %v993
    %v995 = vpop.f32.mrb[0].mxu0
    %996 = vdwg.mxu0
    %s997 = scalar_lea.vmem [#allocation3], 24
    %998 = vst [vmem:[%s997] sm:$0xff] %v994
    %s999 = scalar_lea.vmem [#allocation2], 32
    %v1000 = vld [vmem:[%s999] sm:$0xff]
    %1001 = vmatprep.subr.mxu0 0.0
    %1002 = vmatpush1.msra.mxu0 %v282
    %1003 = vmatprep.subr.mxu0 0.0
    %1004 = vmatpush1.msra.mxu0 %v283
    %1005 = vmatprep.subr.mxu0 0.0
    %1006 = vmatpush1.msra.mxu0 %v284
    %1007 = vmatprep.subr.mxu0 0.0
    %1008 = vmatpush1.msra.mxu0 %v285
    %1009 = vmatprep.subr.mxu0 0.0
    %1010 = vmatpush1.msra.mxu0 0.0
    %1011 = vmatprep.subr.mxu0 0.0
    %1012 = vmatpush1.msra.mxu0 0.0
    %1013 = vmatprep.subr.mxu0 0.0
    %1014 = vmatpush1.msra.mxu0 0.0
    %1015 = vmatprep.subr.mxu0 0.0
    %1016 = vmatpush1.msra.mxu0 0.0
    %1017 = vmatprep.subr.mxu0 0.0
    %1018 = vmatpush1.msra.mxu0 0.0
    %1019 = vmatprep.subr.mxu0 0.0
    %1020 = vmatpush1.msra.mxu0 0.0
    %1021 = vmatprep.subr.mxu0 0.0
    %1022 = vmatpush1.msra.mxu0 0.0
    %1023 = vmatprep.subr.mxu0 0.0
    %1024 = vmatpush1.msra.mxu0 0.0
    %1025 = vmatprep.subr.mxu0 0.0
    %1026 = vmatpush1.msra.mxu0 0.0
    %1027 = vmatprep.subr.mxu0 0.0
    %1028 = vmatpush1.msra.mxu0 0.0
    %1029 = vmatprep.subr.mxu0 0.0
    %1030 = vmatpush1.msra.mxu0 0.0
    %1031 = vmatprep.subr.mxu0 0.0
    %1032 = vmatpush1.msra.mxu0 0.0
    %1033 = vmatprep.subr.mxu0 0.0
    %1034 = vmatpush1.msra.mxu0 0.0
    %1035 = vmatprep.subr.mxu0 0.0
    %1036 = vmatpush1.msra.mxu0 0.0
    %1037 = vmatprep.subr.mxu0 0.0
    %1038 = vmatpush1.msra.mxu0 0.0
    %1039 = vmatprep.subr.mxu0 0.0
    %1040 = vmatpush1.msra.mxu0 0.0
    %1041 = vmatprep.subr.mxu0 0.0
    %1042 = vmatpush1.msra.mxu0 0.0
    %1043 = vmatprep.subr.mxu0 0.0
    %1044 = vmatpush1.msra.mxu0 0.0
    %1045 = vmatprep.subr.mxu0 0.0
    %1046 = vmatpush1.msra.mxu0 0.0
    %1047 = vmatprep.subr.mxu0 0.0
    %1048 = vmatpush1.msra.mxu0 0.0
    %1049 = vmatprep.subr.mxu0 0.0
    %1050 = vmatpush1.msra.mxu0 0.0
    %1051 = vmatprep.subr.mxu0 0.0
    %1052 = vmatpush1.msra.mxu0 0.0
    %1053 = vmatprep.subr.mxu0 0.0
    %1054 = vmatpush1.msra.mxu0 0.0
    %1055 = vmatprep.subr.mxu0 0.0
    %1056 = vmatpush1.msra.mxu0 0.0
    %1057 = vmatprep.subr.mxu0 0.0
    %1058 = vmatpush1.msra.mxu0 0.0
    %1059 = vmatprep.subr.mxu0 0.0
    %1060 = vmatpush1.msra.mxu0 0.0
    %1061 = vmatprep.subr.mxu0 0.0
    %1062 = vmatpush1.msra.mxu0 0.0
    %1063 = vmatprep.subr.mxu0 0.0
    %1064 = vmatpush1.msra.mxu0 0.0
    %1065 = vmatprep.mubr.f32.mxu0 0.0
    %1066 = vmatmul.mubr.f32.gmra.mrb[0].mxu0 %v925
    %v1067 = vpop.f32.mrb[0].mxu0
    %v1068 = vadd.f32 0.0, %v1067
    %v1069 = vpop.f32.mrb[0].mxu0
    %1070 = vdwg.mxu0
    %v1071 = vadd.f32 %v1000, %v1068
    %v1072 = vxor.u32 %v1071, 2147483648
    %v1073 = vmul.f32 %v1072, 1.442695
    %v1074 = vpow.pop %v1073
    %v1075 = vadd.f32 %v1074, 1.0
    %v1076 = vrcp.pop %v1075
    %v1077 = vmul.f32 1.0, %v1076
    %v1078 = vmul.f32 %v1077, 2.0
    %v1079 = vsub.f32 %v1078, 1.0
    %v1080 = vmul.f32 %v1077, %v915
    %1082 = vrot.lane.b32.xlu0 %v1079, 64
    %v1083 = vpop.permute.xlu0 %1082
    %v1085 = vmul.f32 %v1077, %v1083
    %1087 = vrot.lane.b32.xlu0 %v1085, 32
    %v1088 = vpop.permute.xlu0 %1087
    %v1090 = vadd.f32 %v1080, %v1088
    %v1091 = vtanh.pop %v1090
    %1093 = vrot.lane.b32.xlu0 %v1091, 64
    %v1094 = vpop.permute.xlu0 %1093
    %v1096 = vmul.f32 %v1077, %v1094
    %1098 = vrot.lane.b32.xlu0 %v1096, 32
    %v1099 = vpop.permute.xlu0 %1098
    %v1100 = vsel %vm292, %v1099, 0
    %1102 = vmatprep.subr.mxu0 0.0
    %1103 = vmatpush1.msra.mxu0 %v286
    %1104 = vmatprep.subr.mxu0 0.0
    %1105 = vmatpush1.msra.mxu0 %v287
    %1106 = vmatprep.subr.mxu0 0.0
    %1107 = vmatpush1.msra.mxu0 %v288
    %1108 = vmatprep.subr.mxu0 0.0
    %1109 = vmatpush1.msra.mxu0 %v289
    %1110 = vmatprep.subr.mxu0 0.0
    %1111 = vmatpush1.msra.mxu0 0.0
    %1112 = vmatprep.subr.mxu0 0.0
    %1113 = vmatpush1.msra.mxu0 0.0
    %1114 = vmatprep.subr.mxu0 0.0
    %1115 = vmatpush1.msra.mxu0 0.0
    %1116 = vmatprep.subr.mxu0 0.0
    %1117 = vmatpush1.msra.mxu0 0.0
    %1118 = vmatprep.subr.mxu0 0.0
    %1119 = vmatpush1.msra.mxu0 0.0
    %1120 = vmatprep.subr.mxu0 0.0
    %1121 = vmatpush1.msra.mxu0 0.0
    %1122 = vmatprep.subr.mxu0 0.0
    %1123 = vmatpush1.msra.mxu0 0.0
    %1124 = vmatprep.subr.mxu0 0.0
    %1125 = vmatpush1.msra.mxu0 0.0
    %1126 = vmatprep.subr.mxu0 0.0
    %1127 = vmatpush1.msra.mxu0 0.0
    %1128 = vmatprep.subr.mxu0 0.0
    %1129 = vmatpush1.msra.mxu0 0.0
    %1130 = vmatprep.subr.mxu0 0.0
    %1131 = vmatpush1.msra.mxu0 0.0
    %1132 = vmatprep.subr.mxu0 0.0
    %1133 = vmatpush1.msra.mxu0 0.0
    %1134 = vmatprep.subr.mxu0 0.0
    %1135 = vmatpush1.msra.mxu0 0.0
    %1136 = vmatprep.subr.mxu0 0.0
    %1137 = vmatpush1.msra.mxu0 0.0
    %1138 = vmatprep.subr.mxu0 0.0
    %1139 = vmatpush1.msra.mxu0 0.0
    %1140 = vmatprep.subr.mxu0 0.0
    %1141 = vmatpush1.msra.mxu0 0.0
    %1142 = vmatprep.subr.mxu0 0.0
    %1143 = vmatpush1.msra.mxu0 0.0
    %1144 = vmatprep.subr.mxu0 0.0
    %1145 = vmatpush1.msra.mxu0 0.0
    %1146 = vmatprep.subr.mxu0 0.0
    %1147 = vmatpush1.msra.mxu0 0.0
    %1148 = vmatprep.subr.mxu0 0.0
    %1149 = vmatpush1.msra.mxu0 0.0
    %1150 = vmatprep.subr.mxu0 0.0
    %1151 = vmatpush1.msra.mxu0 0.0
    %1152 = vmatprep.subr.mxu0 0.0
    %1153 = vmatpush1.msra.mxu0 0.0
    %1154 = vmatprep.subr.mxu0 0.0
    %1155 = vmatpush1.msra.mxu0 0.0
    %1156 = vmatprep.subr.mxu0 0.0
    %1157 = vmatpush1.msra.mxu0 0.0
    %1158 = vmatprep.subr.mxu0 0.0
    %1159 = vmatpush1.msra.mxu0 0.0
    %1160 = vmatprep.subr.mxu0 0.0
    %1161 = vmatpush1.msra.mxu0 0.0
    %1162 = vmatprep.subr.mxu0 0.0
    %1163 = vmatpush1.msra.mxu0 0.0
    %1164 = vmatprep.subr.mxu0 0.0
    %1165 = vmatpush1.msra.mxu0 0.0
    %1166 = vmatprep.mubr.f32.mxu0 0.0
    %1167 = vmatmul.mubr.f32.gmra.mrb[0].mxu0 %v1100
    %v1168 = vpop.f32.mrb[0].mxu0
    %v1169 = vadd.f32 %v396, %v1168
    %v1170 = vpop.f32.mrb[0].mxu0
    %1171 = vdwg.mxu0
    %s1172 = scalar_lea.vmem [#allocation3], 32
    %1173 = vst [vmem:[%s1172] sm:$0xff] %v1169
    %s1174 = scalar_lea.vmem [#allocation2], 40
    %v1175 = vld [vmem:[%s1174] sm:$0xff]
    %1176 = vmatprep.subr.mxu0 0.0
    %1177 = vmatpush1.msra.mxu0 %v282
    %1178 = vmatprep.subr.mxu0 0.0
    %1179 = vmatpush1.msra.mxu0 %v283
    %1180 = vmatprep.subr.mxu0 0.0
    %1181 = vmatpush1.msra.mxu0 %v284
    %1182 = vmatprep.subr.mxu0 0.0
    %1183 = vmatpush1.msra.mxu0 %v285
    %1184 = vmatprep.subr.mxu0 0.0
    %1185 = vmatpush1.msra.mxu0 0.0
    %1186 = vmatprep.subr.mxu0 0.0
    %1187 = vmatpush1.msra.mxu0 0.0
    %1188 = vmatprep.subr.mxu0 0.0
    %1189 = vmatpush1.msra.mxu0 0.0
    %1190 = vmatprep.subr.mxu0 0.0
    %1191 = vmatpush1.msra.mxu0 0.0
    %1192 = vmatprep.subr.mxu0 0.0
    %1193 = vmatpush1.msra.mxu0 0.0
    %1194 = vmatprep.subr.mxu0 0.0
    %1195 = vmatpush1.msra.mxu0 0.0
    %1196 = vmatprep.subr.mxu0 0.0
    %1197 = vmatpush1.msra.mxu0 0.0
    %1198 = vmatprep.subr.mxu0 0.0
    %1199 = vmatpush1.msra.mxu0 0.0
    %1200 = vmatprep.subr.mxu0 0.0
    %1201 = vmatpush1.msra.mxu0 0.0
    %1202 = vmatprep.subr.mxu0 0.0
    %1203 = vmatpush1.msra.mxu0 0.0
    %1204 = vmatprep.subr.mxu0 0.0
    %1205 = vmatpush1.msra.mxu0 0.0
    %1206 = vmatprep.subr.mxu0 0.0
    %1207 = vmatpush1.msra.mxu0 0.0
    %1208 = vmatprep.subr.mxu0 0.0
    %1209 = vmatpush1.msra.mxu0 0.0
    %1210 = vmatprep.subr.mxu0 0.0
    %1211 = vmatpush1.msra.mxu0 0.0
    %1212 = vmatprep.subr.mxu0 0.0
    %1213 = vmatpush1.msra.mxu0 0.0
    %1214 = vmatprep.subr.mxu0 0.0
    %1215 = vmatpush1.msra.mxu0 0.0
    %1216 = vmatprep.subr.mxu0 0.0
    %1217 = vmatpush1.msra.mxu0 0.0
    %1218 = vmatprep.subr.mxu0 0.0
    %1219 = vmatpush1.msra.mxu0 0.0
    %1220 = vmatprep.subr.mxu0 0.0
    %1221 = vmatpush1.msra.mxu0 0.0
    %1222 = vmatprep.subr.mxu0 0.0
    %1223 = vmatpush1.msra.mxu0 0.0
    %1224 = vmatprep.subr.mxu0 0.0
    %1225 = vmatpush1.msra.mxu0 0.0
    %1226 = vmatprep.subr.mxu0 0.0
    %1227 = vmatpush1.msra.mxu0 0.0
    %1228 = vmatprep.subr.mxu0 0.0
    %1229 = vmatpush1.msra.mxu0 0.0
    %1230 = vmatprep.subr.mxu0 0.0
    %1231 = vmatpush1.msra.mxu0 0.0
    %1232 = vmatprep.subr.mxu0 0.0
    %1233 = vmatpush1.msra.mxu0 0.0
    %1234 = vmatprep.subr.mxu0 0.0
    %1235 = vmatpush1.msra.mxu0 0.0
    %1236 = vmatprep.subr.mxu0 0.0
    %1237 = vmatpush1.msra.mxu0 0.0
    %1238 = vmatprep.subr.mxu0 0.0
    %1239 = vmatpush1.msra.mxu0 0.0
    %1240 = vmatprep.mubr.f32.mxu0 0.0
    %1241 = vmatmul.mubr.f32.gmra.mrb[0].mxu0 %v1100
    %v1242 = vpop.f32.mrb[0].mxu0
    %v1243 = vadd.f32 0.0, %v1242
    %v1244 = vpop.f32.mrb[0].mxu0
    %1245 = vdwg.mxu0
    %v1246 = vadd.f32 %v1175, %v1243
    %v1247 = vxor.u32 %v1246, 2147483648
    %v1248 = vmul.f32 %v1247, 1.442695
    %v1249 = vpow.pop %v1248
    %v1250 = vadd.f32 %v1249, 1.0
    %v1251 = vrcp.pop %v1250
    %v1252 = vmul.f32 1.0, %v1251
    %v1253 = vmul.f32 %v1252, 2.0
    %v1254 = vsub.f32 %v1253, 1.0
    %v1255 = vmul.f32 %v1252, %v1090
    %1257 = vrot.lane.b32.xlu0 %v1254, 64
    %v1258 = vpop.permute.xlu0 %1257
    %v1260 = vmul.f32 %v1252, %v1258
    %1262 = vrot.lane.b32.xlu0 %v1260, 32
    %v1263 = vpop.permute.xlu0 %1262
    %v1265 = vadd.f32 %v1255, %v1263
    %v1266 = vtanh.pop %v1265
    %1268 = vrot.lane.b32.xlu0 %v1266, 64
    %v1269 = vpop.permute.xlu0 %1268
    %v1271 = vmul.f32 %v1252, %v1269
    %1273 = vrot.lane.b32.xlu0 %v1271, 32
    %v1274 = vpop.permute.xlu0 %1273
    %v1275 = vsel %vm292, %v1274, 0
    %1277 = vmatprep.subr.mxu0 0.0
    %1278 = vmatpush1.msra.mxu0 %v286
    %1279 = vmatprep.subr.mxu0 0.0
    %1280 = vmatpush1.msra.mxu0 %v287
    %1281 = vmatprep.subr.mxu0 0.0
    %1282 = vmatpush1.msra.mxu0 %v288
    %1283 = vmatprep.subr.mxu0 0.0
    %1284 = vmatpush1.msra.mxu0 %v289
    %1285 = vmatprep.subr.mxu0 0.0
    %1286 = vmatpush1.msra.mxu0 0.0
    %1287 = vmatprep.subr.mxu0 0.0
    %1288 = vmatpush1.msra.mxu0 0.0
    %1289 = vmatprep.subr.mxu0 0.0
    %1290 = vmatpush1.msra.mxu0 0.0
    %1291 = vmatprep.subr.mxu0 0.0
    %1292 = vmatpush1.msra.mxu0 0.0
    %1293 = vmatprep.subr.mxu0 0.0
    %1294 = vmatpush1.msra.mxu0 0.0
    %1295 = vmatprep.subr.mxu0 0.0
    %1296 = vmatpush1.msra.mxu0 0.0
    %1297 = vmatprep.subr.mxu0 0.0
    %1298 = vmatpush1.msra.mxu0 0.0
    %1299 = vmatprep.subr.mxu0 0.0
    %1300 = vmatpush1.msra.mxu0 0.0
    %1301 = vmatprep.subr.mxu0 0.0
    %1302 = vmatpush1.msra.mxu0 0.0
    %1303 = vmatprep.subr.mxu0 0.0
    %1304 = vmatpush1.msra.mxu0 0.0
    %1305 = vmatprep.subr.mxu0 0.0
    %1306 = vmatpush1.msra.mxu0 0.0
    %1307 = vmatprep.subr.mxu0 0.0
    %1308 = vmatpush1.msra.mxu0 0.0
    %1309 = vmatprep.subr.mxu0 0.0
    %1310 = vmatpush1.msra.mxu0 0.0
    %1311 = vmatprep.subr.mxu0 0.0
    %1312 = vmatpush1.msra.mxu0 0.0
    %1313 = vmatprep.subr.mxu0 0.0
    %1314 = vmatpush1.msra.mxu0 0.0
    %1315 = vmatprep.subr.mxu0 0.0
    %1316 = vmatpush1.msra.mxu0 0.0
    %1317 = vmatprep.subr.mxu0 0.0
    %1318 = vmatpush1.msra.mxu0 0.0
    %1319 = vmatprep.subr.mxu0 0.0
    %1320 = vmatpush1.msra.mxu0 0.0
    %1321 = vmatprep.subr.mxu0 0.0
    %1322 = vmatpush1.msra.mxu0 0.0
    %1323 = vmatprep.subr.mxu0 0.0
    %1324 = vmatpush1.msra.mxu0 0.0
    %1325 = vmatprep.subr.mxu0 0.0
    %1326 = vmatpush1.msra.mxu0 0.0
    %1327 = vmatprep.subr.mxu0 0.0
    %1328 = vmatpush1.msra.mxu0 0.0
    %1329 = vmatprep.subr.mxu0 0.0
    %1330 = vmatpush1.msra.mxu0 0.0
    %1331 = vmatprep.subr.mxu0 0.0
    %1332 = vmatpush1.msra.mxu0 0.0
    %1333 = vmatprep.subr.mxu0 0.0
    %1334 = vmatpush1.msra.mxu0 0.0
    %1335 = vmatprep.subr.mxu0 0.0
    %1336 = vmatpush1.msra.mxu0 0.0
    %1337 = vmatprep.subr.mxu0 0.0
    %1338 = vmatpush1.msra.mxu0 0.0
    %1339 = vmatprep.subr.mxu0 0.0
    %1340 = vmatpush1.msra.mxu0 0.0
    %1341 = vmatprep.mubr.f32.mxu0 0.0
    %1342 = vmatmul.mubr.f32.gmra.mrb[0].mxu0 %v1275
    %v1343 = vpop.f32.mrb[0].mxu0
    %v1344 = vadd.f32 %v396, %v1343
    %v1345 = vpop.f32.mrb[0].mxu0
    %1346 = vdwg.mxu0
    %s1347 = scalar_lea.vmem [#allocation3], 40
    %1348 = vst [vmem:[%s1347] sm:$0xff] %v1344
    %s1349 = scalar_lea.vmem [#allocation2], 48
    %v1350 = vld [vmem:[%s1349] sm:$0xff]
    %1351 = vmatprep.subr.mxu0 0.0
    %1352 = vmatpush1.msra.mxu0 %v282
    %1353 = vmatprep.subr.mxu0 0.0
    %1354 = vmatpush1.msra.mxu0 %v283
    %1355 = vmatprep.subr.mxu0 0.0
    %1356 = vmatpush1.msra.mxu0 %v284
    %1357 = vmatprep.subr.mxu0 0.0
    %1358 = vmatpush1.msra.mxu0 %v285
    %1359 = vmatprep.subr.mxu0 0.0
    %1360 = vmatpush1.msra.mxu0 0.0
    %1361 = vmatprep.subr.mxu0 0.0
    %1362 = vmatpush1.msra.mxu0 0.0
    %1363 = vmatprep.subr.mxu0 0.0
    %1364 = vmatpush1.msra.mxu0 0.0
    %1365 = vmatprep.subr.mxu0 0.0
    %1366 = vmatpush1.msra.mxu0 0.0
    %1367 = vmatprep.subr.mxu0 0.0
    %1368 = vmatpush1.msra.mxu0 0.0
    %1369 = vmatprep.subr.mxu0 0.0
    %1370 = vmatpush1.msra.mxu0 0.0
    %1371 = vmatprep.subr.mxu0 0.0
    %1372 = vmatpush1.msra.mxu0 0.0
    %1373 = vmatprep.subr.mxu0 0.0
    %1374 = vmatpush1.msra.mxu0 0.0
    %1375 = vmatprep.subr.mxu0 0.0
    %1376 = vmatpush1.msra.mxu0 0.0
    %1377 = vmatprep.subr.mxu0 0.0
    %1378 = vmatpush1.msra.mxu0 0.0
    %1379 = vmatprep.subr.mxu0 0.0
    %1380 = vmatpush1.msra.mxu0 0.0
    %1381 = vmatprep.subr.mxu0 0.0
    %1382 = vmatpush1.msra.mxu0 0.0
    %1383 = vmatprep.subr.mxu0 0.0
    %1384 = vmatpush1.msra.mxu0 0.0
    %1385 = vmatprep.subr.mxu0 0.0
    %1386 = vmatpush1.msra.mxu0 0.0
    %1387 = vmatprep.subr.mxu0 0.0
    %1388 = vmatpush1.msra.mxu0 0.0
    %1389 = vmatprep.subr.mxu0 0.0
    %1390 = vmatpush1.msra.mxu0 0.0
    %1391 = vmatprep.subr.mxu0 0.0
    %1392 = vmatpush1.msra.mxu0 0.0
    %1393 = vmatprep.subr.mxu0 0.0
    %1394 = vmatpush1.msra.mxu0 0.0
    %1395 = vmatprep.subr.mxu0 0.0
    %1396 = vmatpush1.msra.mxu0 0.0
    %1397 = vmatprep.subr.mxu0 0.0
    %1398 = vmatpush1.msra.mxu0 0.0
    %1399 = vmatprep.subr.mxu0 0.0
    %1400 = vmatpush1.msra.mxu0 0.0
    %1401 = vmatprep.subr.mxu0 0.0
    %1402 = vmatpush1.msra.mxu0 0.0
    %1403 = vmatprep.subr.mxu0 0.0
    %1404 = vmatpush1.msra.mxu0 0.0
    %1405 = vmatprep.subr.mxu0 0.0
    %1406 = vmatpush1.msra.mxu0 0.0
    %1407 = vmatprep.subr.mxu0 0.0
    %1408 = vmatpush1.msra.mxu0 0.0
    %1409 = vmatprep.subr.mxu0 0.0
    %1410 = vmatpush1.msra.mxu0 0.0
    %1411 = vmatprep.subr.mxu0 0.0
    %1412 = vmatpush1.msra.mxu0 0.0
    %1413 = vmatprep.subr.mxu0 0.0
    %1414 = vmatpush1.msra.mxu0 0.0
    %1415 = vmatprep.mubr.f32.mxu0 0.0
    %1416 = vmatmul.mubr.f32.gmra.mrb[0].mxu0 %v1275
    %v1417 = vpop.f32.mrb[0].mxu0
    %v1418 = vadd.f32 0.0, %v1417
    %v1419 = vpop.f32.mrb[0].mxu0
    %1420 = vdwg.mxu0
    %v1421 = vadd.f32 %v1350, %v1418
    %v1422 = vxor.u32 %v1421, 2147483648
    %v1423 = vmul.f32 %v1422, 1.442695
    %v1424 = vpow.pop %v1423
    %v1425 = vadd.f32 %v1424, 1.0
    %v1426 = vrcp.pop %v1425
    %v1427 = vmul.f32 1.0, %v1426
    %v1428 = vmul.f32 %v1427, 2.0
    %v1429 = vsub.f32 %v1428, 1.0
    %v1430 = vmul.f32 %v1427, %v1265
    %1432 = vrot.lane.b32.xlu0 %v1429, 64
    %v1433 = vpop.permute.xlu0 %1432
    %v1435 = vmul.f32 %v1427, %v1433
    %1437 = vrot.lane.b32.xlu0 %v1435, 32
    %v1438 = vpop.permute.xlu0 %1437
    %v1440 = vadd.f32 %v1430, %v1438
    %v1441 = vtanh.pop %v1440
    %1443 = vrot.lane.b32.xlu0 %v1441, 64
    %v1444 = vpop.permute.xlu0 %1443
    %v1446 = vmul.f32 %v1427, %v1444
    %1448 = vrot.lane.b32.xlu0 %v1446, 32
    %v1449 = vpop.permute.xlu0 %1448
    %v1450 = vsel %vm292, %v1449, 0
    %1452 = vmatprep.subr.mxu0 0.0
    %1453 = vmatpush1.msra.mxu0 %v286
    %1454 = vmatprep.subr.mxu0 0.0
    %1455 = vmatpush1.msra.mxu0 %v287
    %1456 = vmatprep.subr.mxu0 0.0
    %1457 = vmatpush1.msra.mxu0 %v288
    %1458 = vmatprep.subr.mxu0 0.0
    %1459 = vmatpush1.msra.mxu0 %v289
    %1460 = vmatprep.subr.mxu0 0.0
    %1461 = vmatpush1.msra.mxu0 0.0
    %1462 = vmatprep.subr.mxu0 0.0
    %1463 = vmatpush1.msra.mxu0 0.0
    %1464 = vmatprep.subr.mxu0 0.0
    %1465 = vmatpush1.msra.mxu0 0.0
    %1466 = vmatprep.subr.mxu0 0.0
    %1467 = vmatpush1.msra.mxu0 0.0
    %1468 = vmatprep.subr.mxu0 0.0
    %1469 = vmatpush1.msra.mxu0 0.0
    %1470 = vmatprep.subr.mxu0 0.0
    %1471 = vmatpush1.msra.mxu0 0.0
    %1472 = vmatprep.subr.mxu0 0.0
    %1473 = vmatpush1.msra.mxu0 0.0
    %1474 = vmatprep.subr.mxu0 0.0
    %1475 = vmatpush1.msra.mxu0 0.0
    %1476 = vmatprep.subr.mxu0 0.0
    %1477 = vmatpush1.msra.mxu0 0.0
    %1478 = vmatprep.subr.mxu0 0.0
    %1479 = vmatpush1.msra.mxu0 0.0
    %1480 = vmatprep.subr.mxu0 0.0
    %1481 = vmatpush1.msra.mxu0 0.0
    %1482 = vmatprep.subr.mxu0 0.0
    %1483 = vmatpush1.msra.mxu0 0.0
    %1484 = vmatprep.subr.mxu0 0.0
    %1485 = vmatpush1.msra.mxu0 0.0
    %1486 = vmatprep.subr.mxu0 0.0
    %1487 = vmatpush1.msra.mxu0 0.0
    %1488 = vmatprep.subr.mxu0 0.0
    %1489 = vmatpush1.msra.mxu0 0.0
    %1490 = vmatprep.subr.mxu0 0.0
    %1491 = vmatpush1.msra.mxu0 0.0
    %1492 = vmatprep.subr.mxu0 0.0
    %1493 = vmatpush1.msra.mxu0 0.0
    %1494 = vmatprep.subr.mxu0 0.0
    %1495 = vmatpush1.msra.mxu0 0.0
    %1496 = vmatprep.subr.mxu0 0.0
    %1497 = vmatpush1.msra.mxu0 0.0
    %1498 = vmatprep.subr.mxu0 0.0
    %1499 = vmatpush1.msra.mxu0 0.0
    %1500 = vmatprep.subr.mxu0 0.0
    %1501 = vmatpush1.msra.mxu0 0.0
    %1502 = vmatprep.subr.mxu0 0.0
    %1503 = vmatpush1.msra.mxu0 0.0
    %1504 = vmatprep.subr.mxu0 0.0
    %1505 = vmatpush1.msra.mxu0 0.0
    %1506 = vmatprep.subr.mxu0 0.0
    %1507 = vmatpush1.msra.mxu0 0.0
    %1508 = vmatprep.subr.mxu0 0.0
    %1509 = vmatpush1.msra.mxu0 0.0
    %1510 = vmatprep.subr.mxu0 0.0
    %1511 = vmatpush1.msra.mxu0 0.0
    %1512 = vmatprep.subr.mxu0 0.0
    %1513 = vmatpush1.msra.mxu0 0.0
    %1514 = vmatprep.subr.mxu0 0.0
    %1515 = vmatpush1.msra.mxu0 0.0
    %1516 = vmatprep.mubr.f32.mxu0 0.0
    %1517 = vmatmul.mubr.f32.gmra.mrb[0].mxu0 %v1450
    %v1518 = vpop.f32.mrb[0].mxu0
    %v1519 = vadd.f32 %v396, %v1518
    %v1520 = vpop.f32.mrb[0].mxu0
    %1521 = vdwg.mxu0
    %s1522 = scalar_lea.vmem [#allocation3], 48
    %1523 = vst [vmem:[%s1522] sm:$0xff] %v1519
    %s1524 = scalar_lea.vmem [#allocation2], 56
    %v1525 = vld [vmem:[%s1524] sm:$0xff]
    %1526 = vmatprep.subr.mxu0 0.0
    %1527 = vmatpush1.msra.mxu0 %v282
    %1528 = vmatprep.subr.mxu0 0.0
    %1529 = vmatpush1.msra.mxu0 %v283
    %1530 = vmatprep.subr.mxu0 0.0
    %1531 = vmatpush1.msra.mxu0 %v284
    %1532 = vmatprep.subr.mxu0 0.0
    %1533 = vmatpush1.msra.mxu0 %v285
    %1534 = vmatprep.subr.mxu0 0.0
    %1535 = vmatpush1.msra.mxu0 0.0
    %1536 = vmatprep.subr.mxu0 0.0
    %1537 = vmatpush1.msra.mxu0 0.0
    %1538 = vmatprep.subr.mxu0 0.0
    %1539 = vmatpush1.msra.mxu0 0.0
    %1540 = vmatprep.subr.mxu0 0.0
    %1541 = vmatpush1.msra.mxu0 0.0
    %1542 = vmatprep.subr.mxu0 0.0
    %1543 = vmatpush1.msra.mxu0 0.0
    %1544 = vmatprep.subr.mxu0 0.0
    %1545 = vmatpush1.msra.mxu0 0.0
    %1546 = vmatprep.subr.mxu0 0.0
    %1547 = vmatpush1.msra.mxu0 0.0
    %1548 = vmatprep.subr.mxu0 0.0
    %1549 = vmatpush1.msra.mxu0 0.0
    %1550 = vmatprep.subr.mxu0 0.0
    %1551 = vmatpush1.msra.mxu0 0.0
    %1552 = vmatprep.subr.mxu0 0.0
    %1553 = vmatpush1.msra.mxu0 0.0
    %1554 = vmatprep.subr.mxu0 0.0
    %1555 = vmatpush1.msra.mxu0 0.0
    %1556 = vmatprep.subr.mxu0 0.0
    %1557 = vmatpush1.msra.mxu0 0.0
    %1558 = vmatprep.subr.mxu0 0.0
    %1559 = vmatpush1.msra.mxu0 0.0
    %1560 = vmatprep.subr.mxu0 0.0
    %1561 = vmatpush1.msra.mxu0 0.0
    %1562 = vmatprep.subr.mxu0 0.0
    %1563 = vmatpush1.msra.mxu0 0.0
    %1564 = vmatprep.subr.mxu0 0.0
    %1565 = vmatpush1.msra.mxu0 0.0
    %1566 = vmatprep.subr.mxu0 0.0
    %1567 = vmatpush1.msra.mxu0 0.0
    %1568 = vmatprep.subr.mxu0 0.0
    %1569 = vmatpush1.msra.mxu0 0.0
    %1570 = vmatprep.subr.mxu0 0.0
    %1571 = vmatpush1.msra.mxu0 0.0
    %1572 = vmatprep.subr.mxu0 0.0
    %1573 = vmatpush1.msra.mxu0 0.0
    %1574 = vmatprep.subr.mxu0 0.0
    %1575 = vmatpush1.msra.mxu0 0.0
    %1576 = vmatprep.subr.mxu0 0.0
    %1577 = vmatpush1.msra.mxu0 0.0
    %1578 = vmatprep.subr.mxu0 0.0
    %1579 = vmatpush1.msra.mxu0 0.0
    %1580 = vmatprep.subr.mxu0 0.0
    %1581 = vmatpush1.msra.mxu0 0.0
    %1582 = vmatprep.subr.mxu0 0.0
    %1583 = vmatpush1.msra.mxu0 0.0
    %1584 = vmatprep.subr.mxu0 0.0
    %1585 = vmatpush1.msra.mxu0 0.0
    %1586 = vmatprep.subr.mxu0 0.0
    %1587 = vmatpush1.msra.mxu0 0.0
    %1588 = vmatprep.subr.mxu0 0.0
    %1589 = vmatpush1.msra.mxu0 0.0
    %1590 = vmatprep.mubr.f32.mxu0 0.0
    %1591 = vmatmul.mubr.f32.gmra.mrb[0].mxu0 %v1450
    %v1592 = vpop.f32.mrb[0].mxu0
    %v1593 = vadd.f32 0.0, %v1592
    %v1594 = vpop.f32.mrb[0].mxu0
    %1595 = vdwg.mxu0
    %v1596 = vadd.f32 %v1525, %v1593
    %v1597 = vxor.u32 %v1596, 2147483648
    %v1598 = vmul.f32 %v1597, 1.442695
    %v1599 = vpow.pop %v1598
    %v1600 = vadd.f32 %v1599, 1.0
    %v1601 = vrcp.pop %v1600
    %v1602 = vmul.f32 1.0, %v1601
    %v1603 = vmul.f32 %v1602, 2.0
    %v1604 = vsub.f32 %v1603, 1.0
    %v1605 = vmul.f32 %v1602, %v1440
    %1607 = vrot.lane.b32.xlu0 %v1604, 64
    %v1608 = vpop.permute.xlu0 %1607
    %v1610 = vmul.f32 %v1602, %v1608
    %1612 = vrot.lane.b32.xlu0 %v1610, 32
    %v1613 = vpop.permute.xlu0 %1612
    %v1615 = vadd.f32 %v1605, %v1613
    %v1616 = vtanh.pop %v1615
    %1618 = vrot.lane.b32.xlu0 %v1616, 64
    %v1619 = vpop.permute.xlu0 %1618
    %v1621 = vmul.f32 %v1602, %v1619
    %1623 = vrot.lane.b32.xlu0 %v1621, 32
    %v1624 = vpop.permute.xlu0 %1623
    %v1625 = vsel %vm292, %v1624, 0
    %1627 = vmatprep.subr.mxu0 0.0
    %1628 = vmatpush1.msra.mxu0 %v286
    %1629 = vmatprep.subr.mxu0 0.0
    %1630 = vmatpush1.msra.mxu0 %v287
    %1631 = vmatprep.subr.mxu0 0.0
    %1632 = vmatpush1.msra.mxu0 %v288
    %1633 = vmatprep.subr.mxu0 0.0
    %1634 = vmatpush1.msra.mxu0 %v289
    %1635 = vmatprep.subr.mxu0 0.0
    %1636 = vmatpush1.msra.mxu0 0.0
    %1637 = vmatprep.subr.mxu0 0.0
    %1638 = vmatpush1.msra.mxu0 0.0
    %1639 = vmatprep.subr.mxu0 0.0
    %1640 = vmatpush1.msra.mxu0 0.0
    %1641 = vmatprep.subr.mxu0 0.0
    %1642 = vmatpush1.msra.mxu0 0.0
    %1643 = vmatprep.subr.mxu0 0.0
    %1644 = vmatpush1.msra.mxu0 0.0
    %1645 = vmatprep.subr.mxu0 0.0
    %1646 = vmatpush1.msra.mxu0 0.0
    %1647 = vmatprep.subr.mxu0 0.0
    %1648 = vmatpush1.msra.mxu0 0.0
    %1649 = vmatprep.subr.mxu0 0.0
    %1650 = vmatpush1.msra.mxu0 0.0
    %1651 = vmatprep.subr.mxu0 0.0
    %1652 = vmatpush1.msra.mxu0 0.0
    %1653 = vmatprep.subr.mxu0 0.0
    %1654 = vmatpush1.msra.mxu0 0.0
    %1655 = vmatprep.subr.mxu0 0.0
    %1656 = vmatpush1.msra.mxu0 0.0
    %1657 = vmatprep.subr.mxu0 0.0
    %1658 = vmatpush1.msra.mxu0 0.0
    %1659 = vmatprep.subr.mxu0 0.0
    %1660 = vmatpush1.msra.mxu0 0.0
    %1661 = vmatprep.subr.mxu0 0.0
    %1662 = vmatpush1.msra.mxu0 0.0
    %1663 = vmatprep.subr.mxu0 0.0
    %1664 = vmatpush1.msra.mxu0 0.0
    %1665 = vmatprep.subr.mxu0 0.0
    %1666 = vmatpush1.msra.mxu0 0.0
    %1667 = vmatprep.subr.mxu0 0.0
    %1668 = vmatpush1.msra.mxu0 0.0
    %1669 = vmatprep.subr.mxu0 0.0
    %1670 = vmatpush1.msra.mxu0 0.0
    %1671 = vmatprep.subr.mxu0 0.0
    %1672 = vmatpush1.msra.mxu0 0.0
    %1673 = vmatprep.subr.mxu0 0.0
    %1674 = vmatpush1.msra.mxu0 0.0
    %1675 = vmatprep.subr.mxu0 0.0
    %1676 = vmatpush1.msra.mxu0 0.0
    %1677 = vmatprep.subr.mxu0 0.0
    %1678 = vmatpush1.msra.mxu0 0.0
    %1679 = vmatprep.subr.mxu0 0.0
    %1680 = vmatpush1.msra.mxu0 0.0
    %1681 = vmatprep.subr.mxu0 0.0
    %1682 = vmatpush1.msra.mxu0 0.0
    %1683 = vmatprep.subr.mxu0 0.0
    %1684 = vmatpush1.msra.mxu0 0.0
    %1685 = vmatprep.subr.mxu0 0.0
    %1686 = vmatpush1.msra.mxu0 0.0
    %1687 = vmatprep.subr.mxu0 0.0
    %1688 = vmatpush1.msra.mxu0 0.0
    %1689 = vmatprep.subr.mxu0 0.0
    %1690 = vmatpush1.msra.mxu0 0.0
    %1691 = vmatprep.mubr.f32.mxu0 0.0
    %1692 = vmatmul.mubr.f32.gmra.mrb[0].mxu0 %v1625
    %v1693 = vpop.f32.mrb[0].mxu0
    %v1694 = vadd.f32 %v396, %v1693
    %v1695 = vpop.f32.mrb[0].mxu0
    %1696 = vdwg.mxu0
    %s1697 = scalar_lea.vmem [#allocation3], 56
    %1698 = vst [vmem:[%s1697] sm:$0xff] %v1694
    // Predicated region
    $region34: #{tpu_custom_call.1} parent=1 // pred_check
      _
    $region35: #{tpu_custom_call.1} parent=1 // pred_check_branch
      %1700 = sbr.rel (0) target = $region37
    $region36: #{tpu_custom_call.1} parent=1 // pred_region
      %s1702 = ssub.s32 1024, 1024
      %1703 = vsyncadd [#allocation4], %s1702
      %s1704 = sshll.u32 [#allocation3], 4
      %s1705 = int_to_ptr.vmem [resolvable:$true] %s1704
      %1710 = dma.vmem_to_hbm [thread:$0]  %s1705, 1024, %s8, [#allocation4], 128, 128, 8
    $region37: #{tpu_custom_call.1} parent=1 // pred_fallthru
      _
    // Predicated region
    $region38: #{tpu_custom_call.1} parent=1 // pred_check
      _
    $region39: #{tpu_custom_call.1} parent=1 // pred_check_branch
      %1712 = sbr.rel (0) target = $region41
    $region40: #{tpu_custom_call.1} parent=1 // pred_region
      %1713 = dma.done [#allocation4], 1024
    $region41: #{tpu_custom_call.1} parent=1 // pred_fallthru
      _
    %1714 = vsyncpa [#allocation4], 1

</llo_original>
